<compile_context>
chip_gen: v7x
topology: tpu7x:2x2x1
jax: 0.10.0
libtpu: 0.0.40
codegen_flags: <defaults>
</compile_context>

<pallas_src>
import functools
import math

import jax
import jax.numpy as jnp
from jax import lax
from jax.experimental import pallas as pl
from jax.experimental.pallas import tpu as pltpu


NEG_INF = -1e30       # finite "-inf": exp(m_prev - m_new) never produces NaN
LEAKY_SLOPE = 0.2     # GATConv default negative_slope
SRC_COL0 = 8          # column offset of att_src scores inside the padded score slab


# ---------------------------------------------------------------------------
# Kernels
# ---------------------------------------------------------------------------

def gat_project_kernel(x_ref, w_ref, acat_ref, h_ref, s_ref):
    """hmat = x @ W ; scores = hmat @ A_cat (lane-dense 128-wide result).

    A_cat column h (h < heads) holds att_dst[h] for head h's channel block,
    column SRC_COL0+h holds att_src[h]; the rest are zero padding.
    """
    h32 = jnp.dot(x_ref[...].astype(w_ref.dtype), w_ref[...],
                  preferred_element_type=jnp.float32)
    h_c = h32.astype(h_ref.dtype)          # bf16 on v6e/v7x: halves hmat HBM traffic
    h_ref[...] = h_c
    s_ref[...] = jnp.dot(h_c, acat_ref[...], preferred_element_type=jnp.float32)


def gat_attn_kernel(dsc_ref, ssc_ref, h_ref, adj_ref, scale_ref, shift_ref,
                    o_ref, m_sc, l_sc, acc_sc, *, heads, out_ch):
    """Tiled masked-softmax GAT aggregation with an online softmax.

    grid = (dst_tiles [parallel], src_tiles [arbitrary]).  Running per-head
    row max (m), row sum (l) and the alpha@h accumulator persist in VMEM
    scratch across the src axis; the (tm, ts) int8 adjacency tile and the
    (ts, H*C) hmat tile are the streamed operands.  Epilogue (head mean +
    folded bias/BN + ReLU) runs on the last src tile only.
    """
    j = pl.program_id(1)

    @pl.when(j == 0)
    def _init():
        m_sc[...] = jnp.full_like(m_sc, NEG_INF)
        l_sc[...] = jnp.zeros_like(l_sc)
        acc_sc[...] = jnp.zeros_like(acc_sc)

    mask = adj_ref[...] != 0                                     # (tm, ts) from int8
    h_tile = h_ref[...]                                          # (ts, H*C) compute dtype

    for hh in range(heads):                                      # heads: small & static
        sl = slice(hh * out_ch, (hh + 1) * out_ch)               # lane-aligned slice
        e = dsc_ref[:, hh:hh + 1] + ssc_ref[hh:hh + 1, :]        # (tm, ts)
        e = jnp.maximum(e, LEAKY_SLOPE * e)                      # LeakyReLU(0.2), 1 op
        e = jnp.where(mask, e, NEG_INF)                          # single mask apply

        m_prev = m_sc[:, hh:hh + 1]                              # (tm, 1)
        m_new = jnp.maximum(m_prev, jnp.max(e, axis=1, keepdims=True))
        corr = jnp.exp(m_prev - m_new)
        p = jnp.exp(e - m_new)                                   # (tm, ts)
        l_sc[:, hh:hh + 1] = corr * l_sc[:, hh:hh + 1] + jnp.sum(
            p, axis=1, keepdims=True)
        acc_sc[:, sl] = corr * acc_sc[:, sl] + jnp.dot(
            p.astype(h_tile.dtype), h_tile[:, sl],
            preferred_element_type=jnp.float32)
        m_sc[:, hh:hh + 1] = m_new

    @pl.when(j == pl.num_programs(1) - 1)
    def _epilogue():
        total = None
        for hh in range(heads):
            sl = slice(hh * out_ch, (hh + 1) * out_ch)
            inv_l = pl.reciprocal(l_sc[:, hh:hh + 1], approx=True)   # EUP slot
            o_h = acc_sc[:, sl] * inv_l
            total = o_h if total is None else total + o_h
        y = total * scale_ref[...] + shift_ref[...]   # folded mean/heads + bias + BN
        o_ref[...] = jnp.maximum(y, 0.0)              # ReLU, lane-dense store


def decoder_kernel(z_ref, w1_ref, shift1_ref, w2_ref, b2_ref, sf_ref, o_ref):
    """Fused decoder: (Linear*BN-scale) -> +shift -> ReLU -> Linear -> ReLU -> *sf."""
    z = z_ref[...].astype(w1_ref.dtype)
    y = jnp.dot(z, w1_ref[...], preferred_element_type=jnp.float32) + shift1_ref[...]
    y = jnp.maximum(y, 0.0)
    y = jnp.dot(y.astype(w2_ref.dtype), w2_ref[...],
                preferred_element_type=jnp.float32) + b2_ref[...]
    o_ref[...] = jnp.maximum(y, 0.0) * sf_ref[...]


# ---------------------------------------------------------------------------
# Wrappers
# ---------------------------------------------------------------------------

def _bn_fold(gamma, beta, mean, var, eps=1e-5):
    """BatchNorm1d (eval) folded into scale/shift vectors."""
    scale = gamma * lax.rsqrt(var + eps)
    return scale, beta - mean * scale


def _build_att_matrix(asrc, adst):
    """(H, C) att_src / att_dst -> block-structured (H*C, 128):
    column h = att_dst[h], column SRC_COL0+h = att_src[h], remaining zero."""
    heads, c = asrc.shape
    assert heads <= SRC_COL0, "layout assumes heads <= 8"
    a = jnp.zeros((heads * c, 128), jnp.float32)
    for h in range(heads):
        a = a.at[h * c:(h + 1) * c, h].set(adst[h])
        a = a.at[h * c:(h + 1) * c, SRC_COL0 + h].set(asrc[h])
    return a


def _round_up(n, m):
    return ((n + m - 1) // m) * m


def _choose_tiles(n, tm, ts):
    """Clamp tiles to the graph size, keep >=2 dst tiles (v7x has 2 TCs) and
    return the padded node count (multiple of lcm(tm, ts))."""
    n128 = _round_up(n, 128)
    tm = max(128, min((tm // 128) * 128, n128))
    ts = max(128, min((ts // 128) * 128, n128))
    if n128 >= 256:
        tm = max(128, min(tm, (n128 // 2 // 128) * 128))
    lcm = tm * ts // math.gcd(tm, ts)
    return tm, ts, _round_up(n, lcm)


def gat_layer(x, w, asrc, adst, bias, adj, bn_scale, bn_shift, *, heads, out_ch,
              tm, ts, compute_dtype, vmem_limit_bytes=None):
    """GATConv(heads, concat=False, self loops) -> BatchNorm1d(eval) -> ReLU.

    `x` / `adj` are already padded so tm | N and ts | N.
    """
    n, din = x.shape
    a_cat = _build_att_matrix(asrc, adst).astype(compute_dtype)
    w_c = w.astype(compute_dtype)

    # ---- projection + all-head attention scores (one lane-dense MXU matmul) --
    hmat, s_all = pl.pallas_call(
        gat_project_kernel,
        out_shape=(jax.ShapeDtypeStruct((n, heads * out_ch), compute_dtype),
                   jax.ShapeDtypeStruct((n, 128), jnp.float32)),
        grid=(n // tm,),
        in_specs=[pl.BlockSpec((tm, din), lambda i: (i, 0)),
                  pl.BlockSpec((din, heads * out_ch), lambda i: (0, 0)),
                  pl.BlockSpec((heads * out_ch, 128), lambda i: (0, 0))],
        out_specs=(pl.BlockSpec((tm, heads * out_ch), lambda i: (i, 0)),
                   pl.BlockSpec((tm, 128), lambda i: (i, 0))),
        compiler_params=pltpu.CompilerParams(
            dimension_semantics=("parallel",),
            vmem_limit_bytes=vmem_limit_bytes),
    )(x, w_c, a_cat)

    # Transposed src scores as an (8, N) sublane/lane-aligned slab (tiny relayout
    # of an 8-column lane-aligned slice; rows >= heads are zero and unused).
    src_scores_t = s_all[:, SRC_COL0:SRC_COL0 + 8].T

    # Fold head-mean + GAT bias into the BN scale/shift applied in the epilogue.
    scale_h = bn_scale / heads
    shift_h = bias * bn_scale + bn_shift

    # ---- tiled masked softmax + aggregation (flash-style online softmax) ----
    kernel = functools.partial(gat_attn_kernel, heads=heads, out_ch=out_ch)
    return pl.pallas_call(
        kernel,
        out_shape=jax.ShapeDtypeStruct((n, out_ch), jnp.float32),
        grid=(n // tm, n // ts),
        in_specs=[
            pl.BlockSpec((tm, 128), lambda i, j: (i, 0)),              # dst scores (cols 0..H-1)
            pl.BlockSpec((8, ts), lambda i, j: (0, j)),                # src scores^T
            pl.BlockSpec((ts, heads * out_ch), lambda i, j: (j, 0)),   # hmat (src rows)
            pl.BlockSpec((tm, ts), lambda i, j: (i, j)),               # adj tile, int8
            pl.BlockSpec((1, out_ch), lambda i, j: (0, 0)),            # folded BN scale
            pl.BlockSpec((1, out_ch), lambda i, j: (0, 0)),            # folded BN shift
        ],
        out_specs=pl.BlockSpec((tm, out_ch), lambda i, j: (i, 0)),
        scratch_shapes=[pltpu.VMEM((tm, heads), jnp.float32),          # running max
                        pltpu.VMEM((tm, heads), jnp.float32),          # running sum
                        pltpu.VMEM((tm, heads * out_ch), jnp.float32)],  # alpha@h acc
        compiler_params=pltpu.CompilerParams(
            dimension_semantics=("parallel", "arbitrary"),
            vmem_limit_bytes=vmem_limit_bytes),
    )(s_all, src_scores_t, hmat, adj, scale_h, shift_h)


def decoder(z, w1, b1, bn_scale, bn_shift, w2, b2, size_factors, *, tm,
            compute_dtype, vmem_limit_bytes=None):
    n, zd = z.shape
    hd = w1.shape[1]
    dout = w2.shape[1]
    w1_eff = (w1 * bn_scale).astype(compute_dtype)     # BN scale folded into W1 cols
    shift1 = b1 * bn_scale + bn_shift                  # bias + BN shift folded
    w2_c = w2.astype(compute_dtype)
    return pl.pallas_call(
        decoder_kernel,
        out_shape=jax.ShapeDtypeStruct((n, dout), jnp.float32),
        grid=(n // tm,),
        in_specs=[pl.BlockSpec((tm, zd), lambda i: (i, 0)),
                  pl.BlockSpec((zd, hd), lambda i: (0, 0)),
                  pl.BlockSpec((1, hd), lambda i: (0, 0)),
                  pl.BlockSpec((hd, dout), lambda i: (0, 0)),
                  pl.BlockSpec((1, dout), lambda i: (0, 0)),
                  pl.BlockSpec((tm, 1), lambda i: (i, 0))],
        out_specs=pl.BlockSpec((tm, dout), lambda i: (i, 0)),
        compiler_params=pltpu.CompilerParams(
            dimension_semantics=("parallel",),
            vmem_limit_bytes=vmem_limit_bytes),
    )(z, w1_eff, shift1, w2_c, b2, size_factors)


def gnn_impute_forward(params, x, adj, size_factors, *, heads, h_dim, z_dim,
                       tm=512, ts=1024, compute_dtype=jnp.bfloat16,
                       vmem_limit_bytes=None):
    """Full GNNImpute forward (eval mode).  N is padded up to a tile multiple;
    padded src columns are masked by zero adjacency, padded dst rows are
    sliced off at the end."""
    n = x.shape[0]
    tm, ts, n_pad = _choose_tiles(n, tm, ts)
    if n_pad > n:
        pad = n_pad - n
        x = jnp.pad(x, ((0, pad), (0, 0)))
        adj = jnp.pad(adj, ((0, pad), (0, pad)))
        size_factors = jnp.pad(size_factors, ((0, pad), (0, 0)))

    s1, t1 = _bn_fold(params["bn1_g"], params["bn1_b"], params["bn1_m"], params["bn1_v"])
    s2, t2 = _bn_fold(params["bn2_g"], params["bn2_b"], params["bn2_m"], params["bn2_v"])
    s3, t3 = _bn_fold(params["bn3_g"], params["bn3_b"], params["bn3_m"], params["bn3_v"])

    h = gat_layer(x, params["enc1_w"], params["enc1_asrc"], params["enc1_adst"],
                  params["enc1_b"], adj, s1, t1, heads=heads, out_ch=h_dim,
                  tm=tm, ts=ts, compute_dtype=compute_dtype,
                  vmem_limit_bytes=vmem_limit_bytes)
    # TODO(synk): training-mode dropout (p=0.5) between encoder layers omitted (eval).
    z = gat_layer(h, params["enc2_w"], params["enc2_asrc"], params["enc2_adst"],
                  params["enc2_b"], adj, s2, t2, heads=heads, out_ch=z_dim,
                  tm=tm, ts=ts, compute_dtype=compute_dtype,
                  vmem_limit_bytes=vmem_limit_bytes)
    out = decoder(z, params["dec1_w"], params["dec1_b"], s3, t3,
                  params["dec2_w"], params["dec2_b"], size_factors, tm=tm,
                  compute_dtype=compute_dtype, vmem_limit_bytes=vmem_limit_bytes)
    return out[:n]


# ---------------------------------------------------------------------------
# Pure-JAX reference (same math, no Pallas) for a correctness check
# ---------------------------------------------------------------------------

def _gat_ref(x, w, asrc, adst, bias, adj, scale, shift, heads, out_ch):
    hmat = jnp.dot(x, w, preferred_element_type=jnp.float32)
    mask = adj != 0
    acc = 0.0
    for hh in range(heads):
        h_h = hmat[:, hh * out_ch:(hh + 1) * out_ch]
        a_src = jnp.sum(h_h * asrc[hh:hh + 1, :], axis=1, keepdims=True).T   # (1, N)
        a_dst = jnp.sum(h_h * adst[hh:hh + 1, :], axis=1, keepdims=True)     # (N, 1)
        e = a_dst + a_src
        e = jnp.where(e > 0, e, LEAKY_SLOPE * e)
        e = jnp.where(mask, e, NEG_INF)
        e = e - jnp.max(e, axis=1, keepdims=True)
        p = jnp.exp(e)
        alpha = p / jnp.sum(p, axis=1, keepdims=True)
        acc = acc + jnp.dot(alpha, h_h, preferred_element_type=jnp.float32)
    out = acc * (1.0 / heads) + bias
    out = out * scale + shift
    return jnp.maximum(out, 0.0)


def forward_reference(p, x, adj, sf, *, heads, h_dim, z_dim):
    s1, t1 = _bn_fold(p["bn1_g"], p["bn1_b"], p["bn1_m"], p["bn1_v"])
    s2, t2 = _bn_fold(p["bn2_g"], p["bn2_b"], p["bn2_m"], p["bn2_v"])
    s3, t3 = _bn_fold(p["bn3_g"], p["bn3_b"], p["bn3_m"], p["bn3_v"])
    h = _gat_ref(x, p["enc1_w"], p["enc1_asrc"], p["enc1_adst"], p["enc1_b"], adj,
                 s1, t1, heads, h_dim)
    z = _gat_ref(h, p["enc2_w"], p["enc2_asrc"], p["enc2_adst"], p["enc2_b"], adj,
                 s2, t2, heads, z_dim)
    d = jnp.dot(z, p["dec1_w"], preferred_element_type=jnp.float32) + p["dec1_b"]
    d = jnp.maximum(d * s3 + t3, 0.0)
    o = jnp.dot(d, p["dec2_w"], preferred_element_type=jnp.float32) + p["dec2_b"]
    return jnp.maximum(o, 0.0) * sf


def _rel_err(a, b):
    return float(jnp.linalg.norm(a - b) / (jnp.linalg.norm(b) + 1e-12))


# ---------------------------------------------------------------------------
# Setup helpers
# ---------------------------------------------------------------------------

def build_adjacency(edge_index, num_nodes):
    """Densify edge_index into an int8 (N_dst, N_src) mask with self loops."""
    src, dst = edge_index[0], edge_index[1]
    adj = jnp.zeros((num_nodes, num_nodes), jnp.int8).at[dst, src].set(1)
    adj = jnp.maximum(adj, jnp.eye(num_nodes, dtype=jnp.int8))
    return adj


def init_params(key, input_dim, h_dim, z_dim, heads):
    ks = jax.random.split(key, 24)
    u = lambda k, s, sc=0.1: (jax.random.uniform(k, s, jnp.float32) - 0.5) * 2 * sc
    pos = lambda k, s: jax.random.uniform(k, s, jnp.float32, 0.5, 1.5)
    return {
        # GATConv 1: lin (Din, H*C), att_src/att_dst (H, C), bias (1, C)
        "enc1_w": u(ks[0], (input_dim, heads * h_dim)),
        "enc1_asrc": u(ks[1], (heads, h_dim)),
        "enc1_adst": u(ks[2], (heads, h_dim)),
        "enc1_b": u(ks[3], (1, h_dim)),
        "bn1_g": pos(ks[4], (1, h_dim)), "bn1_b": u(ks[5], (1, h_dim)),
        "bn1_m": u(ks[6], (1, h_dim)), "bn1_v": pos(ks[7], (1, h_dim)),
        # GATConv 2
        "enc2_w": u(ks[8], (h_dim, heads * z_dim)),
        "enc2_asrc": u(ks[9], (heads, z_dim)),
        "enc2_adst": u(ks[10], (heads, z_dim)),
        "enc2_b": u(ks[11], (1, z_dim)),
        "bn2_g": pos(ks[12], (1, z_dim)), "bn2_b": u(ks[13], (1, z_dim)),
        "bn2_m": u(ks[14], (1, z_dim)), "bn2_v": pos(ks[15], (1, z_dim)),
        # decoder Linear(z_dim, h_dim), BN(h_dim), Linear(h_dim, input_dim)
        "dec1_w": u(ks[16], (z_dim, h_dim)), "dec1_b": u(ks[17], (1, h_dim)),
        "bn3_g": pos(ks[18], (1, h_dim)), "bn3_b": u(ks[19], (1, h_dim)),
        "bn3_m": u(ks[20], (1, h_dim)), "bn3_v": pos(ks[21], (1, h_dim)),
        "dec2_w": u(ks[22], (h_dim, input_dim)), "dec2_b": u(ks[23], (1, input_dim)),
    }


# ---------------------------------------------------------------------------
# Main
# ---------------------------------------------------------------------------

if __name__ == "__main__":
    # N = 200 is NOT a multiple of 128 -> exercises the padding path; feature
    # dims are lane-dense multiples of 128.
    N, INPUT_DIM, H_DIM, Z_DIM, HEADS, E = 200, 256, 128, 128, 3, 1024

    key = jax.random.PRNGKey(0)
    k_x, k_e1, k_e2, k_sf, k_p = jax.random.split(key, 5)

    x = jax.random.uniform(k_x, (N, INPUT_DIM), jnp.float32)           # node features
    edge_index = jnp.stack([
        jax.random.randint(k_e1, (E,), 0, N),                          # sources
        jax.random.randint(k_e2, (E,), 0, N),                          # targets
    ])                                                                 # (2, E)
    size_factors = jax.random.uniform(k_sf, (N, 1), jnp.float32, 0.5, 2.0)

    params = init_params(k_p, INPUT_DIM, H_DIM, Z_DIM, HEADS)
    adj = build_adjacency(edge_index, N)                               # int8 mask

    ref = forward_reference(params, x, adj, size_factors,
                            heads=HEADS, h_dim=H_DIM, z_dim=Z_DIM)
    ref = jax.block_until_ready(ref)

    # f32 compute path: tight check of the kernel math (approx reciprocal is
    # the only intentional deviation from the reference).
    out_f32 = gnn_impute_forward(params, x, adj, size_factors,
                                 heads=HEADS, h_dim=H_DIM, z_dim=Z_DIM,
                                 compute_dtype=jnp.float32)
    out_f32 = jax.block_until_ready(out_f32)
    assert out_f32.shape == (N, INPUT_DIM), out_f32.shape
    assert bool(jnp.all(jnp.isfinite(out_f32)))
    assert _rel_err(out_f32, ref) < 2e-2, "f32 kernel mismatch vs reference"

    # bf16 MXU path (default performance configuration on v6e/v7x).
    out_bf16 = gnn_impute_forward(params, x, adj, size_factors,
                                  heads=HEADS, h_dim=H_DIM, z_dim=Z_DIM,
                                  compute_dtype=jnp.bfloat16)
    out_bf16 = jax.block_until_ready(out_bf16)
    assert out_bf16.shape == (N, INPUT_DIM), out_bf16.shape
    assert _rel_err(out_bf16, ref) < 6e-2, "bf16 kernel mismatch vs reference"

    print("KERNEL_OK")
</pallas_src>

<mosaic_0001>
module attributes {stable_mosaic.version = 11 : i64} {
  func.func @gat_project_kernel(%arg0: i32, %arg1: memref<128x256xf32, #tpu.memory_space<vmem>>, %arg2: memref<256x384xf32, #tpu.memory_space<vmem>>, %arg3: memref<384x128xf32, #tpu.memory_space<vmem>>, %arg4: memref<128x384xf32, #tpu.memory_space<vmem>>, %arg5: memref<128x128xf32, #tpu.memory_space<vmem>>) attributes {dimension_semantics = [#tpu.dimension_semantics<parallel>], iteration_bounds = array<i64: 2>, scalar_prefetch = 0 : i64, scratch_operands = 0 : i64, tpu.core_type = #tpu.core_type<tc>, window_params = [{transform_indices = @transform_0, window_bounds = array<i64: 128, 256>}, {pipeline_mode = #tpu.pipeline_mode<synchronous>, transform_indices = @transform_1, window_bounds = array<i64: 256, 384>}, {pipeline_mode = #tpu.pipeline_mode<synchronous>, transform_indices = @transform_2, window_bounds = array<i64: 384, 128>}, {transform_indices = @transform_3, window_bounds = array<i64: 128, 384>}, {transform_indices = @transform_4, window_bounds = array<i64: 128, 128>}]} {
    %c0 = arith.constant 0 : index
    %c0_0 = arith.constant 0 : index
    %0 = vector.load %arg1[%c0, %c0_0] : memref<128x256xf32, #tpu.memory_space<vmem>>, vector<128x256xf32>
    %c0_1 = arith.constant 0 : index
    %c0_2 = arith.constant 0 : index
    %1 = vector.load %arg2[%c0_1, %c0_2] : memref<256x384xf32, #tpu.memory_space<vmem>>, vector<256x384xf32>
    %cst = arith.constant dense<0.000000e+00> : vector<128x384xf32>
    %2 = tpu.matmul %0, %1, %cst {dimension_numbers = #tpu.dot_dimension_numbers<[1], [0], [0], [1], [0, 0, 1, 1], [], []>} : vector<128x256xf32>, vector<256x384xf32>, vector<128x384xf32> -> vector<128x384xf32>
    %c0_3 = arith.constant 0 : index
    %c0_4 = arith.constant 0 : index
    %3 = vector.load %arg4[%c0_3, %c0_4] : memref<128x384xf32, #tpu.memory_space<vmem>>, vector<128x384xf32>
    tpu.vector_store %arg4[%c0_3, %c0_4], %2 {strides = array<i32>} : memref<128x384xf32, #tpu.memory_space<vmem>>, vector<128x384xf32>,
    %c0_5 = arith.constant 0 : index
    %c0_6 = arith.constant 0 : index
    %4 = vector.load %arg3[%c0_5, %c0_6] : memref<384x128xf32, #tpu.memory_space<vmem>>, vector<384x128xf32>
    %cst_7 = arith.constant dense<0.000000e+00> : vector<128x128xf32>
    %5 = tpu.matmul %2, %4, %cst_7 {dimension_numbers = #tpu.dot_dimension_numbers<[1], [0], [0], [1], [0, 0, 1, 1], [], []>} : vector<128x384xf32>, vector<384x128xf32>, vector<128x128xf32> -> vector<128x128xf32>
    %c0_8 = arith.constant 0 : index
    %c0_9 = arith.constant 0 : index
    %6 = vector.load %arg5[%c0_8, %c0_9] : memref<128x128xf32, #tpu.memory_space<vmem>>, vector<128x128xf32>
    tpu.vector_store %arg5[%c0_8, %c0_9], %5 {strides = array<i32>} : memref<128x128xf32, #tpu.memory_space<vmem>>, vector<128x128xf32>,
    return
  }
  func.func @transform_0(%arg0: i32) -> (i32, i32) {
    %c0_i32 = arith.constant 0 : i32
    %c0_i32_0 = arith.constant 0 : i32
    return %arg0, %c0_i32 : i32, i32
  }
  func.func @transform_1(%arg0: i32) -> (i32, i32) {
    %c0_i32 = arith.constant 0 : i32
    %c0_i32_0 = arith.constant 0 : i32
    %c0_i32_1 = arith.constant 0 : i32
    return %c0_i32, %c0_i32_0 : i32, i32
  }
  func.func @transform_2(%arg0: i32) -> (i32, i32) {
    %c0_i32 = arith.constant 0 : i32
    %c0_i32_0 = arith.constant 0 : i32
    %c0_i32_1 = arith.constant 0 : i32
    return %c0_i32, %c0_i32_0 : i32, i32
  }
  func.func @transform_3(%arg0: i32) -> (i32, i32) {
    %c0_i32 = arith.constant 0 : i32
    %c0_i32_0 = arith.constant 0 : i32
    return %arg0, %c0_i32 : i32, i32
  }
  func.func @transform_4(%arg0: i32) -> (i32, i32) {
    %c0_i32 = arith.constant 0 : i32
    %c0_i32_0 = arith.constant 0 : i32
    return %arg0, %c0_i32 : i32, i32
  }
}

</mosaic_0001>

<llo_original>
// kernel: tpu_custom_call.1
$region0: #{tpu_custom_call.1}
  #allocation0 [shape = 'u32[]', space=smem, size = 0x4, offset = 0x4, fixed_abs, tag = 'smem constant byte address 0x4 - core index']
  #allocation1 [shape = 'u32[144,128]{1,0:T(1,128)}', space=vmem, size = 0x12000, scoped, tag = 'internal scratch']
  %s0 = inlined_call_operand.hbm [shape: f32[256,256], index: 0, kind: input, shape index: {}]
  %s1 = inlined_call_operand.hbm [shape: f32[256,384], index: 1, kind: input, shape index: {}]
  %s2 = inlined_call_operand.hbm [shape: f32[384,128], index: 2, kind: input, shape index: {}]
  %s3 = inlined_call_operand.hbm [shape: f32[256,384], index: 3, kind: output, shape index: {0}]
  %s4 = inlined_call_operand.hbm [shape: f32[256,128], index: 4, kind: output, shape index: {1}]
  %5 = xla_tuple %s3, %s4
  %s6 = sld [smem:[#allocation0]]
  $region65: #{tpu_custom_call.1} parent=0
    _
  %s8 = ssub.s32 1, %s6
  %s9 = scalar_select 0, %s8, %s6
  $region1: #{tpu_custom_call.1} parent=0
    #allocation2 [shape = 'u8[262144]{0}', space=vmem, size = 0x40000, scoped, tag = 'input window, operand 0']
    #allocation3 [shape = 's32[2]{0}', space=sflag, size = 0x8, scoped, tag = 'scoped memory for tpu_custom_call.1']
    #allocation4 [shape = 's32[2]{0}', space=sflag, size = 0x8, scoped, tag = 'scoped memory for tpu_custom_call.1']
    #allocation5 [shape = 'u8[393216]{0}', space=vmem, size = 0x60000, scoped, tag = 'input window, operand 1, single buffered']
    #allocation6 [shape = 's32[1]{0}', space=sflag, size = 0x4, scoped, tag = 'scoped memory for tpu_custom_call.1']
    #allocation7 [shape = 'u8[196608]{0}', space=vmem, size = 0x30000, scoped, tag = 'input window, operand 2, single buffered']
    #allocation8 [shape = 'u8[393216]{0}', space=vmem, size = 0x60000, scoped, tag = 'output window, operand 0']
    #allocation9 [shape = 'u8[131072]{0}', space=vmem, size = 0x20000, scoped, tag = 'output window, operand 1']
    #allocation10 [shape = 's32[2]{0}', space=sflag, size = 0x8, scoped, tag = 'scoped memory for tpu_custom_call.1']
    %10 = vsyncpa [#allocation3], 0
    %s11 = scalar_lea.sflag [#allocation3], 1
    %12 = vsyncpa %s11, 0
    %13 = vsyncpa [#allocation6], 0
    %14 = vsyncpa [#allocation4], 0
    %s15 = scalar_lea.sflag [#allocation4], 1
    %16 = vsyncpa %s15, 0
    %17 = vsyncpa [#allocation10], 0
    %s18 = scalar_lea.sflag [#allocation10], 1
    %19 = vsyncpa %s18, 0
    loop: start=0, step=1, limit=4
    $region2: #{tpu_custom_call.1} parent=1 // loop_pre_header
      _
    $region3: #{tpu_custom_call.1} parent=1 // loop_header
      %s21 = sphi 0, %s25
      %p22 = scmp.ge.s32.totalorder %s21, 4
      %s31 = sphi 0, %s33
      %s34 = sphi 0, %s31
      %s35 = sphi 0, %s34
      %s51 = sphi 0, %s35
      %s55 = sphi 0, %s55
      %s57 = sphi 0, %s55
      %s58 = sphi 0, %s57
      %s72 = sphi 0, %s58
      %s76 = sphi 0, %s76
      %s78 = sphi 0, %s76
      %s79 = sphi 0, %s78
      %s93 = sphi 0, %s79
      %s99 = sphi 0, %s101
      %s102 = sphi 0, %s99
      %s103 = sphi 0, %s102
      %s119 = sphi 0, %s103
      %s125 = sphi 0, %s127
      %s128 = sphi 0, %s125
      %s129 = sphi 0, %s128
      %s145 = sphi 0, %s129
    $region4: #{tpu_custom_call.1} parent=1 // loop_header_branch
      %24 = sbr.rel (%p22) target = $region8
    $region5: #{tpu_custom_call.1} parent=1 // loop_body
      %s26 = ssub.s32 %s21, 1
      %s27 = ssub.s32 %s21, 2
      %s28 = sadd.s32 %s21, 1
      %s29 = ssub.s32 %s21, %s28
      %p30 = scmp.eq.s32.totalorder %s29, 0
      %s32 = sadd.s32 %s31, 1
      %s33 = scalar_select %p30, %s31, %s32
      %p36 = pneg %p30
      %p37 = scmp.eq.s32.totalorder %s21, 1
      %p38 = por %p36, %p37
      %p39 = scmp.ne.s32.totalorder %s31, %s34
      %p40 = scmp.eq.s32.totalorder %s21, 0
      %p41 = por %p39, %p40
      %p42 = scmp.ne.s32.totalorder %s31, %s34
      %p43 = scmp.eq.s32.totalorder %s26, 1
      %p44 = por %p42, %p43
      %p45 = scmp.ne.s32.totalorder %s34, %s35
      %p46 = scmp.eq.s32.totalorder %s26, 0
      %p47 = por %p45, %p46
      %p48 = scmp.ne.s32.totalorder %s34, %s35
      %p49 = scmp.eq.s32.totalorder %s27, 1
      %p50 = por %p48, %p49
      %p52 = scmp.ne.s32.totalorder %s35, %s51
      %p53 = scmp.eq.s32.totalorder %s27, 0
      %p54 = por %p52, %p53
      %s56 = sadd.s32 %s55, 1
      %p59 = scmp.eq.s32.totalorder %s21, 1
      %p60 = scmp.ne.s32.totalorder %s55, %s57
      %p61 = scmp.eq.s32.totalorder %s21, 0
      %p62 = por %p60, %p61
      %p63 = scmp.ne.s32.totalorder %s55, %s57
      %p64 = scmp.eq.s32.totalorder %s26, 1
      %p65 = por %p63, %p64
      %p66 = scmp.ne.s32.totalorder %s57, %s58
      %p67 = scmp.eq.s32.totalorder %s26, 0
      %p68 = por %p66, %p67
      %p69 = scmp.ne.s32.totalorder %s57, %s58
      %p70 = scmp.eq.s32.totalorder %s27, 1
      %p71 = por %p69, %p70
      %p73 = scmp.ne.s32.totalorder %s58, %s72
      %p74 = scmp.eq.s32.totalorder %s27, 0
      %p75 = por %p73, %p74
      %s77 = sadd.s32 %s76, 1
      %p80 = scmp.eq.s32.totalorder %s21, 1
      %p81 = scmp.ne.s32.totalorder %s76, %s78
      %p82 = scmp.eq.s32.totalorder %s21, 0
      %p83 = por %p81, %p82
      %p84 = scmp.ne.s32.totalorder %s76, %s78
      %p85 = scmp.eq.s32.totalorder %s26, 1
      %p86 = por %p84, %p85
      %p87 = scmp.ne.s32.totalorder %s78, %s79
      %p88 = scmp.eq.s32.totalorder %s26, 0
      %p89 = por %p87, %p88
      %p90 = scmp.ne.s32.totalorder %s78, %s79
      %p91 = scmp.eq.s32.totalorder %s27, 1
      %p92 = por %p90, %p91
      %p94 = scmp.ne.s32.totalorder %s79, %s93
      %p95 = scmp.eq.s32.totalorder %s27, 0
      %p96 = por %p94, %p95
      %s97 = ssub.s32 %s21, %s28
      %p98 = scmp.eq.s32.totalorder %s97, 0
      %s100 = sadd.s32 %s99, 1
      %s101 = scalar_select %p98, %s99, %s100
      %p104 = pneg %p98
      %p105 = scmp.eq.s32.totalorder %s21, 1
      %p106 = por %p104, %p105
      %p107 = scmp.ne.s32.totalorder %s99, %s102
      %p108 = scmp.eq.s32.totalorder %s21, 0
      %p109 = por %p107, %p108
      %p110 = scmp.ne.s32.totalorder %s99, %s102
      %p111 = scmp.eq.s32.totalorder %s26, 1
      %p112 = por %p110, %p111
      %p113 = scmp.ne.s32.totalorder %s102, %s103
      %p114 = scmp.eq.s32.totalorder %s26, 0
      %p115 = por %p113, %p114
      %p116 = scmp.ne.s32.totalorder %s102, %s103
      %p117 = scmp.eq.s32.totalorder %s27, 1
      %p118 = por %p116, %p117
      %p120 = scmp.ne.s32.totalorder %s103, %s119
      %p121 = scmp.eq.s32.totalorder %s27, 0
      %p122 = por %p120, %p121
      %s123 = ssub.s32 %s21, %s28
      %p124 = scmp.eq.s32.totalorder %s123, 0
      %s126 = sadd.s32 %s125, 1
      %s127 = scalar_select %p124, %s125, %s126
      %p130 = pneg %p124
      %p131 = scmp.eq.s32.totalorder %s21, 1
      %p132 = por %p130, %p131
      %p133 = scmp.ne.s32.totalorder %s125, %s128
      %p134 = scmp.eq.s32.totalorder %s21, 0
      %p135 = por %p133, %p134
      %p136 = scmp.ne.s32.totalorder %s125, %s128
      %p137 = scmp.eq.s32.totalorder %s26, 1
      %p138 = por %p136, %p137
      %p139 = scmp.ne.s32.totalorder %s128, %s129
      %p140 = scmp.eq.s32.totalorder %s26, 0
      %p141 = por %p139, %p140
      %p142 = scmp.ne.s32.totalorder %s128, %s129
      %p143 = scmp.eq.s32.totalorder %s27, 1
      %p144 = por %p142, %p143
      %p146 = scmp.ne.s32.totalorder %s129, %s145
      %p147 = scmp.eq.s32.totalorder %s27, 0
      %p148 = por %p146, %p147
      %p149 = scmp.le.s32.totalorder 1, %s21
      %p150 = scmp.lt.s32.totalorder %s21, 3
      %p151 = pnand %p149, %p150
      %p152 = pneg %p151
      // Predicated region
      $region9: #{tpu_custom_call.1} parent=5 // pred_check
        _
      $region10: #{tpu_custom_call.1} parent=5 // pred_check_branch
        %154 = sbr.rel (%p151) target = $region12
      $region11: #{tpu_custom_call.1} parent=5 // pred_region
        %s155 = ssub.s32 %s21, 1
        // Predicated region
        $region13: #{tpu_custom_call.1} parent=11 // pred_check
          %p156 = pneg %p68
        $region14: #{tpu_custom_call.1} parent=11 // pred_check_branch
          %158 = sbr.rel (%p156) target = $region16
        $region15: #{tpu_custom_call.1} parent=11 // pred_region
          %s160 = ssub.s32 12288, 12288
          %161 = vsyncadd [#allocation6], %s160
          %s162 = sshll.u32 [#allocation5], 4
          %s163 = int_to_ptr.vmem [resolvable:$true] %s162
          %168 = dma.hbm_to_vmem [thread:$0]  %s1, 12288, %s163, [#allocation6], 384, 384, 24
        $region16: #{tpu_custom_call.1} parent=11 // pred_fallthru
          _
        // Predicated region
        $region17: #{tpu_custom_call.1} parent=11 // pred_check
          %p169 = pneg %p89
        $region18: #{tpu_custom_call.1} parent=11 // pred_check_branch
          %171 = sbr.rel (%p169) target = $region20
        $region19: #{tpu_custom_call.1} parent=11 // pred_region
          %s173 = ssub.s32 6144, 6144
          %174 = vsyncadd [#allocation6], %s173
          %s175 = sshll.u32 [#allocation7], 4
          %s176 = int_to_ptr.vmem [resolvable:$true] %s175
          %181 = dma.hbm_to_vmem [thread:$0]  %s2, 6144, %s176, [#allocation6], 128, 128, 8
        $region20: #{tpu_custom_call.1} parent=11 // pred_fallthru
          _
      $region12: #{tpu_custom_call.1} parent=5 // pred_fallthru
        _
      %p182 = scmp.lt.s32.totalorder %s21, 2
      // Predicated region
      $region21: #{tpu_custom_call.1} parent=5 // pred_check
        %p183 = pneg %p182
      $region22: #{tpu_custom_call.1} parent=5 // pred_check_branch
        %185 = sbr.rel (%p183) target = $region24
      $region23: #{tpu_custom_call.1} parent=5 // pred_region
        // Predicated region
        $region25: #{tpu_custom_call.1} parent=23 // pred_check
          %p186 = pneg %p41
        $region26: #{tpu_custom_call.1} parent=23 // pred_check_branch
          %188 = sbr.rel (%p186) target = $region28
        $region27: #{tpu_custom_call.1} parent=23 // pred_region
          %s189 = sand.u32 %s31, 1
          %s190 = scalar_lea.sflag [#allocation3], %s189
          %s191 = sand.u32 %s31, 1
          %s192 = smul.addr %s191, 256
          %s193 = scalar_lea.vmem [#allocation2], %s192
          %s194 = smul.u32 16, %s21
          %s196 = ssub.s32 4096, 4096
          %197 = vsyncadd %s190, %s196
          %s198 = smul.addr %s194, 2
          %s199 = smul.addr %s198, 128
          %s200 = scalar_lea.hbm %s0, %s199
          %s201 = sshll.u32 %s193, 4
          %s202 = int_to_ptr.vmem [resolvable:$true] %s201
          %207 = dma.hbm_to_vmem [thread:$0]  %s200, 4096, %s202, %s190, 256, 256, 16
        $region28: #{tpu_custom_call.1} parent=23 // pred_fallthru
          _
      $region24: #{tpu_custom_call.1} parent=5 // pred_fallthru
        _
      %p208 = scmp.le.s32.totalorder 1, %s21
      %p209 = scmp.lt.s32.totalorder %s21, 3
      %p210 = pnand %p208, %p209
      %p211 = pneg %p210
      // Predicated region
      $region29: #{tpu_custom_call.1} parent=5 // pred_check
        _
      $region30: #{tpu_custom_call.1} parent=5 // pred_check_branch
        %213 = sbr.rel (%p210) target = $region32
      $region31: #{tpu_custom_call.1} parent=5 // pred_region
        %s214 = ssub.s32 %s21, 1
        %s215 = sand.u32 %s34, 1
        %s216 = scalar_lea.sflag [#allocation3], %s215
        %s217 = sand.u32 %s34, 1
        %s218 = smul.addr %s217, 256
        %s219 = scalar_lea.vmem [#allocation2], %s218
        // Predicated region
        $region33: #{tpu_custom_call.1} parent=31 // pred_check
          %p220 = pneg %p47
        $region34: #{tpu_custom_call.1} parent=31 // pred_check_branch
          %222 = sbr.rel (%p220) target = $region36
        $region35: #{tpu_custom_call.1} parent=31 // pred_region
          %223 = dma.done %s216, 4096
        $region36: #{tpu_custom_call.1} parent=31 // pred_fallthru
          _
        // Predicated region
        $region37: #{tpu_custom_call.1} parent=31 // pred_check
          %p224 = pneg %p68
        $region38: #{tpu_custom_call.1} parent=31 // pred_check_branch
          %226 = sbr.rel (%p224) target = $region40
        $region39: #{tpu_custom_call.1} parent=31 // pred_region
          %227 = dma.done [#allocation6], 12288
        $region40: #{tpu_custom_call.1} parent=31 // pred_fallthru
          _
        // Predicated region
        $region41: #{tpu_custom_call.1} parent=31 // pred_check
          %p228 = pneg %p89
        $region42: #{tpu_custom_call.1} parent=31 // pred_check_branch
          %230 = sbr.rel (%p228) target = $region44
        $region43: #{tpu_custom_call.1} parent=31 // pred_region
          %231 = dma.done [#allocation6], 6144
        $region44: #{tpu_custom_call.1} parent=31 // pred_fallthru
          _
        %s232 = sand.u32 %s34, 1
        %s233 = scalar_lea.sflag [#allocation3], %s232
        %s234 = sand.u32 %s34, 1
        %s235 = smul.addr %s234, 256
        %s236 = scalar_lea.vmem [#allocation2], %s235
        %p237 = pneg %p47
        %p238 = pneg %p44
        %p239 = pneg %p68
        %p240 = pneg %p65
        %p241 = pneg %p89
        %p242 = pneg %p86
        %p243 = pneg %p115
        %p244 = pneg %p112
        %s245 = sand.u32 %s102, 1
        %s246 = scalar_lea.sflag [#allocation4], %s245
        %s247 = sand.u32 %s102, 1
        %s248 = smul.addr %s247, 384
        %s249 = scalar_lea.vmem [#allocation8], %s248
        %p250 = pneg %p141
        %p251 = pneg %p138
        %s252 = sand.u32 %s128, 1
        %s253 = scalar_lea.sflag [#allocation10], %s252
        %s254 = sand.u32 %s128, 1
        %s255 = smul.addr %s254, 128
        %s256 = scalar_lea.vmem [#allocation9], %s255
        %s257 = smul.u32 16, %s26
        %s258 = smul.u32 16, %s26
        %s259 = smul.u32 16, %s26
        %v260 = vld [vmem:[%s219] sm:$0xff]
        %v261 = vld [vmem:[%s219 + $0x8] sm:$0xff]
        %v262 = vld [vmem:[%s219 + $0x10] sm:$0xff]
        %v263 = vld [vmem:[%s219 + $0x18] sm:$0xff]
        %v264 = vld [vmem:[%s219 + $0x20] sm:$0xff]
        %v265 = vld [vmem:[%s219 + $0x28] sm:$0xff]
        %v266 = vld [vmem:[%s219 + $0x30] sm:$0xff]
        %v267 = vld [vmem:[%s219 + $0x38] sm:$0xff]
        %v268 = vld [vmem:[%s219 + $0x40] sm:$0xff]
        %v269 = vld [vmem:[%s219 + $0x48] sm:$0xff]
        %v270 = vld [vmem:[%s219 + $0x50] sm:$0xff]
        %v271 = vld [vmem:[%s219 + $0x58] sm:$0xff]
        %v272 = vld [vmem:[%s219 + $0x60] sm:$0xff]
        %v273 = vld [vmem:[%s219 + $0x68] sm:$0xff]
        %v274 = vld [vmem:[%s219 + $0x70] sm:$0xff]
        %v275 = vld [vmem:[%s219 + $0x78] sm:$0xff]
        %v276 = vld [vmem:[%s219 + $0x80] sm:$0xff]
        %v277 = vld [vmem:[%s219 + $0x88] sm:$0xff]
        %v278 = vld [vmem:[%s219 + $0x90] sm:$0xff]
        %v279 = vld [vmem:[%s219 + $0x98] sm:$0xff]
        %v280 = vld [vmem:[%s219 + $0xa0] sm:$0xff]
        %v281 = vld [vmem:[%s219 + $0xa8] sm:$0xff]
        %v282 = vld [vmem:[%s219 + $0xb0] sm:$0xff]
        %v283 = vld [vmem:[%s219 + $0xb8] sm:$0xff]
        %v284 = vld [vmem:[%s219 + $0xc0] sm:$0xff]
        %v285 = vld [vmem:[%s219 + $0xc8] sm:$0xff]
        %v286 = vld [vmem:[%s219 + $0xd0] sm:$0xff]
        %v287 = vld [vmem:[%s219 + $0xd8] sm:$0xff]
        %v288 = vld [vmem:[%s219 + $0xe0] sm:$0xff]
        %v289 = vld [vmem:[%s219 + $0xe8] sm:$0xff]
        %v290 = vld [vmem:[%s219 + $0xf0] sm:$0xff]
        %v291 = vld [vmem:[%s219 + $0xf8] sm:$0xff]
        %v292 = vld [vmem:[#allocation5] sm:$0xff]
        %v293 = vld [vmem:[#allocation5 + $0x8] sm:$0xff]
        %v294 = vld [vmem:[#allocation5 + $0x10] sm:$0xff]
        %v295 = vld [vmem:[#allocation5 + $0x18] sm:$0xff]
        %v296 = vld [vmem:[#allocation5 + $0x20] sm:$0xff]
        %v297 = vld [vmem:[#allocation5 + $0x28] sm:$0xff]
        %v298 = vld [vmem:[#allocation5 + $0x30] sm:$0xff]
        %v299 = vld [vmem:[#allocation5 + $0x38] sm:$0xff]
        %v300 = vld [vmem:[#allocation5 + $0x40] sm:$0xff]
        %v301 = vld [vmem:[#allocation5 + $0x48] sm:$0xff]
        %v302 = vld [vmem:[#allocation5 + $0x50] sm:$0xff]
        %v303 = vld [vmem:[#allocation5 + $0x58] sm:$0xff]
        %v304 = vld [vmem:[#allocation5 + $0x60] sm:$0xff]
        %v305 = vld [vmem:[#allocation5 + $0x68] sm:$0xff]
        %v306 = vld [vmem:[#allocation5 + $0x70] sm:$0xff]
        %v307 = vld [vmem:[#allocation5 + $0x78] sm:$0xff]
        %v308 = vld [vmem:[#allocation5 + $0x80] sm:$0xff]
        %v309 = vld [vmem:[#allocation5 + $0x88] sm:$0xff]
        %v310 = vld [vmem:[#allocation5 + $0x90] sm:$0xff]
        %v311 = vld [vmem:[#allocation5 + $0x98] sm:$0xff]
        %v312 = vld [vmem:[#allocation5 + $0xa0] sm:$0xff]
        %v313 = vld [vmem:[#allocation5 + $0xa8] sm:$0xff]
        %v314 = vld [vmem:[#allocation5 + $0xb0] sm:$0xff]
        %v315 = vld [vmem:[#allocation5 + $0xb8] sm:$0xff]
        %v316 = vld [vmem:[#allocation5 + $0xc0] sm:$0xff]
        %v317 = vld [vmem:[#allocation5 + $0xc8] sm:$0xff]
        %v318 = vld [vmem:[#allocation5 + $0xd0] sm:$0xff]
        %v319 = vld [vmem:[#allocation5 + $0xd8] sm:$0xff]
        %v320 = vld [vmem:[#allocation5 + $0xe0] sm:$0xff]
        %v321 = vld [vmem:[#allocation5 + $0xe8] sm:$0xff]
        %v322 = vld [vmem:[#allocation5 + $0xf0] sm:$0xff]
        %v323 = vld [vmem:[#allocation5 + $0xf8] sm:$0xff]
        %v324 = vld [vmem:[#allocation5 + $0x100] sm:$0xff]
        %v325 = vld [vmem:[#allocation5 + $0x108] sm:$0xff]
        %v326 = vld [vmem:[#allocation5 + $0x110] sm:$0xff]
        %v327 = vld [vmem:[#allocation5 + $0x118] sm:$0xff]
        %v328 = vld [vmem:[#allocation5 + $0x120] sm:$0xff]
        %v329 = vld [vmem:[#allocation5 + $0x128] sm:$0xff]
        %v330 = vld [vmem:[#allocation5 + $0x130] sm:$0xff]
        %v331 = vld [vmem:[#allocation5 + $0x138] sm:$0xff]
        %v332 = vld [vmem:[#allocation5 + $0x140] sm:$0xff]
        %v333 = vld [vmem:[#allocation5 + $0x148] sm:$0xff]
        %v334 = vld [vmem:[#allocation5 + $0x150] sm:$0xff]
        %v335 = vld [vmem:[#allocation5 + $0x158] sm:$0xff]
        %v336 = vld [vmem:[#allocation5 + $0x160] sm:$0xff]
        %v337 = vld [vmem:[#allocation5 + $0x168] sm:$0xff]
        %v338 = vld [vmem:[#allocation5 + $0x170] sm:$0xff]
        %v339 = vld [vmem:[#allocation5 + $0x178] sm:$0xff]
        %v340 = vld [vmem:[#allocation5 + $0x180] sm:$0xff]
        %v341 = vld [vmem:[#allocation5 + $0x188] sm:$0xff]
        %v342 = vld [vmem:[#allocation5 + $0x190] sm:$0xff]
        %v343 = vld [vmem:[#allocation5 + $0x198] sm:$0xff]
        %v344 = vld [vmem:[#allocation5 + $0x1a0] sm:$0xff]
        %v345 = vld [vmem:[#allocation5 + $0x1a8] sm:$0xff]
        %v346 = vld [vmem:[#allocation5 + $0x1b0] sm:$0xff]
        %v347 = vld [vmem:[#allocation5 + $0x1b8] sm:$0xff]
        %v348 = vld [vmem:[#allocation5 + $0x1c0] sm:$0xff]
        %v349 = vld [vmem:[#allocation5 + $0x1c8] sm:$0xff]
        %v350 = vld [vmem:[#allocation5 + $0x1d0] sm:$0xff]
        %v351 = vld [vmem:[#allocation5 + $0x1d8] sm:$0xff]
        %v352 = vld [vmem:[#allocation5 + $0x1e0] sm:$0xff]
        %v353 = vld [vmem:[#allocation5 + $0x1e8] sm:$0xff]
        %v354 = vld [vmem:[#allocation5 + $0x1f0] sm:$0xff]
        %v355 = vld [vmem:[#allocation5 + $0x1f8] sm:$0xff]
        %v356 = vld [vmem:[#allocation5 + $0x200] sm:$0xff]
        %v357 = vld [vmem:[#allocation5 + $0x208] sm:$0xff]
        %v358 = vld [vmem:[#allocation5 + $0x210] sm:$0xff]
        %v359 = vld [vmem:[#allocation5 + $0x218] sm:$0xff]
        %v360 = vld [vmem:[#allocation5 + $0x220] sm:$0xff]
        %v361 = vld [vmem:[#allocation5 + $0x228] sm:$0xff]
        %v362 = vld [vmem:[#allocation5 + $0x230] sm:$0xff]
        %v363 = vld [vmem:[#allocation5 + $0x238] sm:$0xff]
        %v364 = vld [vmem:[#allocation5 + $0x240] sm:$0xff]
        %v365 = vld [vmem:[#allocation5 + $0x248] sm:$0xff]
        %v366 = vld [vmem:[#allocation5 + $0x250] sm:$0xff]
        %v367 = vld [vmem:[#allocation5 + $0x258] sm:$0xff]
        %v368 = vld [vmem:[#allocation5 + $0x260] sm:$0xff]
        %v369 = vld [vmem:[#allocation5 + $0x268] sm:$0xff]
        %v370 = vld [vmem:[#allocation5 + $0x270] sm:$0xff]
        %v371 = vld [vmem:[#allocation5 + $0x278] sm:$0xff]
        %v372 = vld [vmem:[#allocation5 + $0x280] sm:$0xff]
        %v373 = vld [vmem:[#allocation5 + $0x288] sm:$0xff]
        %v374 = vld [vmem:[#allocation5 + $0x290] sm:$0xff]
        %v375 = vld [vmem:[#allocation5 + $0x298] sm:$0xff]
        %v376 = vld [vmem:[#allocation5 + $0x2a0] sm:$0xff]
        %v377 = vld [vmem:[#allocation5 + $0x2a8] sm:$0xff]
        %v378 = vld [vmem:[#allocation5 + $0x2b0] sm:$0xff]
        %v379 = vld [vmem:[#allocation5 + $0x2b8] sm:$0xff]
        %v380 = vld [vmem:[#allocation5 + $0x2c0] sm:$0xff]
        %v381 = vld [vmem:[#allocation5 + $0x2c8] sm:$0xff]
        %v382 = vld [vmem:[#allocation5 + $0x2d0] sm:$0xff]
        %v383 = vld [vmem:[#allocation5 + $0x2d8] sm:$0xff]
        %v384 = vld [vmem:[#allocation5 + $0x2e0] sm:$0xff]
        %v385 = vld [vmem:[#allocation5 + $0x2e8] sm:$0xff]
        %v386 = vld [vmem:[#allocation5 + $0x2f0] sm:$0xff]
        %v387 = vld [vmem:[#allocation5 + $0x2f8] sm:$0xff]
        %388 = vmatprep.subr.mxu0 %v293
        %389 = vmatpush1.msra.mxu0 %v292
        %390 = vmatprep.subr.mxu0 %v296
        %391 = vmatpush1.msra.mxu0 %v295
        %392 = vmatprep.subr.mxu0 %v299
        %393 = vmatpush1.msra.mxu0 %v298
        %394 = vmatprep.subr.mxu0 %v302
        %395 = vmatpush1.msra.mxu0 %v301
        %396 = vmatprep.subr.mxu0 %v305
        %397 = vmatpush1.msra.mxu0 %v304
        %398 = vmatprep.subr.mxu0 %v308
        %399 = vmatpush1.msra.mxu0 %v307
        %400 = vmatprep.subr.mxu0 %v311
        %401 = vmatpush1.msra.mxu0 %v310
        %402 = vmatprep.subr.mxu0 %v314
        %403 = vmatpush1.msra.mxu0 %v313
        %404 = vmatprep.subr.mxu0 %v317
        %405 = vmatpush1.msra.mxu0 %v316
        %406 = vmatprep.subr.mxu0 %v320
        %407 = vmatpush1.msra.mxu0 %v319
        %408 = vmatprep.subr.mxu0 %v323
        %409 = vmatpush1.msra.mxu0 %v322
        %410 = vmatprep.subr.mxu0 %v326
        %411 = vmatpush1.msra.mxu0 %v325
        %412 = vmatprep.subr.mxu0 %v329
        %413 = vmatpush1.msra.mxu0 %v328
        %414 = vmatprep.subr.mxu0 %v332
        %415 = vmatpush1.msra.mxu0 %v331
        %416 = vmatprep.subr.mxu0 %v335
        %417 = vmatpush1.msra.mxu0 %v334
        %418 = vmatprep.subr.mxu0 %v338
        %419 = vmatpush1.msra.mxu0 %v337
        %420 = vmatprep.subr.mxu0 %v341
        %421 = vmatpush1.msra.mxu0 %v340
        %422 = vmatprep.subr.mxu0 %v344
        %423 = vmatpush1.msra.mxu0 %v343
        %424 = vmatprep.subr.mxu0 %v347
        %425 = vmatpush1.msra.mxu0 %v346
        %426 = vmatprep.subr.mxu0 %v350
        %427 = vmatpush1.msra.mxu0 %v349
        %428 = vmatprep.subr.mxu0 %v353
        %429 = vmatpush1.msra.mxu0 %v352
        %430 = vmatprep.subr.mxu0 %v356
        %431 = vmatpush1.msra.mxu0 %v355
        %432 = vmatprep.subr.mxu0 %v359
        %433 = vmatpush1.msra.mxu0 %v358
        %434 = vmatprep.subr.mxu0 %v362
        %435 = vmatpush1.msra.mxu0 %v361
        %436 = vmatprep.subr.mxu0 %v365
        %437 = vmatpush1.msra.mxu0 %v364
        %438 = vmatprep.subr.mxu0 %v368
        %439 = vmatpush1.msra.mxu0 %v367
        %440 = vmatprep.subr.mxu0 %v371
        %441 = vmatpush1.msra.mxu0 %v370
        %442 = vmatprep.subr.mxu0 %v374
        %443 = vmatpush1.msra.mxu0 %v373
        %444 = vmatprep.subr.mxu0 %v377
        %445 = vmatpush1.msra.mxu0 %v376
        %446 = vmatprep.subr.mxu0 %v380
        %447 = vmatpush1.msra.mxu0 %v379
        %448 = vmatprep.subr.mxu0 %v383
        %449 = vmatpush1.msra.mxu0 %v382
        %450 = vmatprep.subr.mxu0 %v386
        %451 = vmatpush1.msra.mxu0 %v385
        %452 = vmatprep.mubr.f32.mxu0 %v261
        %453 = vmatmul.mubr.f32.gmra.mrb[0].mxu0 %v260
        %v454 = vpop.f32.mrb[0].mxu0
        %v455 = vadd.f32 0.0, %v454
        %v456 = vpop.f32.mrb[0].mxu0
        %v457 = vadd.f32 0.0, %v456
        %458 = vmatprep.mubr.f32.mxu0 %v263
        %459 = vmatmul.mubr.f32.gmra.mrb[0].mxu0 %v262
        %v460 = vpop.f32.mrb[0].mxu0
        %v461 = vadd.f32 0.0, %v460
        %v462 = vpop.f32.mrb[0].mxu0
        %v463 = vadd.f32 0.0, %v462
        %464 = vmatprep.mubr.f32.mxu0 %v265
        %465 = vmatmul.mubr.f32.gmra.mrb[0].mxu0 %v264
        %v466 = vpop.f32.mrb[0].mxu0
        %v467 = vadd.f32 0.0, %v466
        %v468 = vpop.f32.mrb[0].mxu0
        %v469 = vadd.f32 0.0, %v468
        %470 = vmatprep.mubr.f32.mxu0 %v267
        %471 = vmatmul.mubr.f32.gmra.mrb[0].mxu0 %v266
        %v472 = vpop.f32.mrb[0].mxu0
        %v473 = vadd.f32 0.0, %v472
        %v474 = vpop.f32.mrb[0].mxu0
        %v475 = vadd.f32 0.0, %v474
        %476 = vmatprep.mubr.f32.mxu0 %v269
        %477 = vmatmul.mubr.f32.gmra.mrb[0].mxu0 %v268
        %v478 = vpop.f32.mrb[0].mxu0
        %v479 = vadd.f32 0.0, %v478
        %v480 = vpop.f32.mrb[0].mxu0
        %v481 = vadd.f32 0.0, %v480
        %482 = vmatprep.mubr.f32.mxu0 %v271
        %483 = vmatmul.mubr.f32.gmra.mrb[0].mxu0 %v270
        %v484 = vpop.f32.mrb[0].mxu0
        %v485 = vadd.f32 0.0, %v484
        %v486 = vpop.f32.mrb[0].mxu0
        %v487 = vadd.f32 0.0, %v486
        %488 = vmatprep.mubr.f32.mxu0 %v273
        %489 = vmatmul.mubr.f32.gmra.mrb[0].mxu0 %v272
        %v490 = vpop.f32.mrb[0].mxu0
        %v491 = vadd.f32 0.0, %v490
        %v492 = vpop.f32.mrb[0].mxu0
        %v493 = vadd.f32 0.0, %v492
        %494 = vmatprep.mubr.f32.mxu0 %v275
        %495 = vmatmul.mubr.f32.gmra.mrb[0].mxu0 %v274
        %v496 = vpop.f32.mrb[0].mxu0
        %v497 = vadd.f32 0.0, %v496
        %v498 = vpop.f32.mrb[0].mxu0
        %v499 = vadd.f32 0.0, %v498
        %500 = vmatprep.mubr.f32.mxu0 %v277
        %501 = vmatmul.mubr.f32.gmra.mrb[0].mxu0 %v276
        %v502 = vpop.f32.mrb[0].mxu0
        %v503 = vadd.f32 0.0, %v502
        %v504 = vpop.f32.mrb[0].mxu0
        %v505 = vadd.f32 0.0, %v504
        %506 = vmatprep.mubr.f32.mxu0 %v279
        %507 = vmatmul.mubr.f32.gmra.mrb[0].mxu0 %v278
        %v508 = vpop.f32.mrb[0].mxu0
        %v509 = vadd.f32 0.0, %v508
        %v510 = vpop.f32.mrb[0].mxu0
        %v511 = vadd.f32 0.0, %v510
        %512 = vmatprep.mubr.f32.mxu0 %v281
        %513 = vmatmul.mubr.f32.gmra.mrb[0].mxu0 %v280
        %v514 = vpop.f32.mrb[0].mxu0
        %v515 = vadd.f32 0.0, %v514
        %v516 = vpop.f32.mrb[0].mxu0
        %v517 = vadd.f32 0.0, %v516
        %518 = vmatprep.mubr.f32.mxu0 %v283
        %519 = vmatmul.mubr.f32.gmra.mrb[0].mxu0 %v282
        %v520 = vpop.f32.mrb[0].mxu0
        %v521 = vadd.f32 0.0, %v520
        %v522 = vpop.f32.mrb[0].mxu0
        %v523 = vadd.f32 0.0, %v522
        %524 = vmatprep.mubr.f32.mxu0 %v285
        %525 = vmatmul.mubr.f32.gmra.mrb[0].mxu0 %v284
        %v526 = vpop.f32.mrb[0].mxu0
        %v527 = vadd.f32 0.0, %v526
        %v528 = vpop.f32.mrb[0].mxu0
        %v529 = vadd.f32 0.0, %v528
        %530 = vmatprep.mubr.f32.mxu0 %v287
        %531 = vmatmul.mubr.f32.gmra.mrb[0].mxu0 %v286
        %v532 = vpop.f32.mrb[0].mxu0
        %v533 = vadd.f32 0.0, %v532
        %v534 = vpop.f32.mrb[0].mxu0
        %v535 = vadd.f32 0.0, %v534
        %536 = vmatprep.mubr.f32.mxu0 %v289
        %537 = vmatmul.mubr.f32.gmra.mrb[0].mxu0 %v288
        %v538 = vpop.f32.mrb[0].mxu0
        %v539 = vadd.f32 0.0, %v538
        %v540 = vpop.f32.mrb[0].mxu0
        %v541 = vadd.f32 0.0, %v540
        %542 = vmatprep.mubr.f32.mxu0 %v291
        %543 = vmatmul.mubr.f32.gmra.mrb[0].mxu0 %v290
        %v544 = vpop.f32.mrb[0].mxu0
        %v545 = vadd.f32 0.0, %v544
        %v546 = vpop.f32.mrb[0].mxu0
        %v547 = vadd.f32 0.0, %v546
        %548 = vdwg.mxu0
        %549 = vmatprep.subr.mxu0 0.0
        %550 = vmatpush1.msra.mxu0 %v294
        %551 = vmatprep.subr.mxu0 0.0
        %552 = vmatpush1.msra.mxu0 %v297
        %553 = vmatprep.subr.mxu0 0.0
        %554 = vmatpush1.msra.mxu0 %v300
        %555 = vmatprep.subr.mxu0 0.0
        %556 = vmatpush1.msra.mxu0 %v303
        %557 = vmatprep.subr.mxu0 0.0
        %558 = vmatpush1.msra.mxu0 %v306
        %559 = vmatprep.subr.mxu0 0.0
        %560 = vmatpush1.msra.mxu0 %v309
        %561 = vmatprep.subr.mxu0 0.0
        %562 = vmatpush1.msra.mxu0 %v312
        %563 = vmatprep.subr.mxu0 0.0
        %564 = vmatpush1.msra.mxu0 %v315
        %565 = vmatprep.subr.mxu0 0.0
        %566 = vmatpush1.msra.mxu0 %v318
        %567 = vmatprep.subr.mxu0 0.0
        %568 = vmatpush1.msra.mxu0 %v321
        %569 = vmatprep.subr.mxu0 0.0
        %570 = vmatpush1.msra.mxu0 %v324
        %571 = vmatprep.subr.mxu0 0.0
        %572 = vmatpush1.msra.mxu0 %v327
        %573 = vmatprep.subr.mxu0 0.0
        %574 = vmatpush1.msra.mxu0 %v330
        %575 = vmatprep.subr.mxu0 0.0
        %576 = vmatpush1.msra.mxu0 %v333
        %577 = vmatprep.subr.mxu0 0.0
        %578 = vmatpush1.msra.mxu0 %v336
        %579 = vmatprep.subr.mxu0 0.0
        %580 = vmatpush1.msra.mxu0 %v339
        %581 = vmatprep.subr.mxu0 0.0
        %582 = vmatpush1.msra.mxu0 %v342
        %583 = vmatprep.subr.mxu0 0.0
        %584 = vmatpush1.msra.mxu0 %v345
        %585 = vmatprep.subr.mxu0 0.0
        %586 = vmatpush1.msra.mxu0 %v348
        %587 = vmatprep.subr.mxu0 0.0
        %588 = vmatpush1.msra.mxu0 %v351
        %589 = vmatprep.subr.mxu0 0.0
        %590 = vmatpush1.msra.mxu0 %v354
        %591 = vmatprep.subr.mxu0 0.0
        %592 = vmatpush1.msra.mxu0 %v357
        %593 = vmatprep.subr.mxu0 0.0
        %594 = vmatpush1.msra.mxu0 %v360
        %595 = vmatprep.subr.mxu0 0.0
        %596 = vmatpush1.msra.mxu0 %v363
        %597 = vmatprep.subr.mxu0 0.0
        %598 = vmatpush1.msra.mxu0 %v366
        %599 = vmatprep.subr.mxu0 0.0
        %600 = vmatpush1.msra.mxu0 %v369
        %601 = vmatprep.subr.mxu0 0.0
        %602 = vmatpush1.msra.mxu0 %v372
        %603 = vmatprep.subr.mxu0 0.0
        %604 = vmatpush1.msra.mxu0 %v375
        %605 = vmatprep.subr.mxu0 0.0
        %606 = vmatpush1.msra.mxu0 %v378
        %607 = vmatprep.subr.mxu0 0.0
        %608 = vmatpush1.msra.mxu0 %v381
        %609 = vmatprep.subr.mxu0 0.0
        %610 = vmatpush1.msra.mxu0 %v384
        %611 = vmatprep.subr.mxu0 0.0
        %612 = vmatpush1.msra.mxu0 %v387
        %613 = vmatprep.mubr.f32.mxu0 %v261
        %614 = vmatmul.mubr.f32.gmra.mrb[0].mxu0 %v260
        %v615 = vpop.f32.mrb[0].mxu0
        %v616 = vadd.f32 0.0, %v615
        %v617 = vpop.f32.mrb[0].mxu0
        %618 = vmatprep.mubr.f32.mxu0 %v263
        %619 = vmatmul.mubr.f32.gmra.mrb[0].mxu0 %v262
        %v620 = vpop.f32.mrb[0].mxu0
        %v621 = vadd.f32 0.0, %v620
        %v622 = vpop.f32.mrb[0].mxu0
        %623 = vmatprep.mubr.f32.mxu0 %v265
        %624 = vmatmul.mubr.f32.gmra.mrb[0].mxu0 %v264
        %v625 = vpop.f32.mrb[0].mxu0
        %v626 = vadd.f32 0.0, %v625
        %v627 = vpop.f32.mrb[0].mxu0
        %628 = vmatprep.mubr.f32.mxu0 %v267
        %629 = vmatmul.mubr.f32.gmra.mrb[0].mxu0 %v266
        %v630 = vpop.f32.mrb[0].mxu0
        %v631 = vadd.f32 0.0, %v630
        %v632 = vpop.f32.mrb[0].mxu0
        %633 = vmatprep.mubr.f32.mxu0 %v269
        %634 = vmatmul.mubr.f32.gmra.mrb[0].mxu0 %v268
        %v635 = vpop.f32.mrb[0].mxu0
        %v636 = vadd.f32 0.0, %v635
        %v637 = vpop.f32.mrb[0].mxu0
        %638 = vmatprep.mubr.f32.mxu0 %v271
        %639 = vmatmul.mubr.f32.gmra.mrb[0].mxu0 %v270
        %v640 = vpop.f32.mrb[0].mxu0
        %v641 = vadd.f32 0.0, %v640
        %v642 = vpop.f32.mrb[0].mxu0
        %643 = vmatprep.mubr.f32.mxu0 %v273
        %644 = vmatmul.mubr.f32.gmra.mrb[0].mxu0 %v272
        %v645 = vpop.f32.mrb[0].mxu0
        %v646 = vadd.f32 0.0, %v645
        %v647 = vpop.f32.mrb[0].mxu0
        %648 = vmatprep.mubr.f32.mxu0 %v275
        %649 = vmatmul.mubr.f32.gmra.mrb[0].mxu0 %v274
        %v650 = vpop.f32.mrb[0].mxu0
        %v651 = vadd.f32 0.0, %v650
        %v652 = vpop.f32.mrb[0].mxu0
        %653 = vmatprep.mubr.f32.mxu0 %v277
        %654 = vmatmul.mubr.f32.gmra.mrb[0].mxu0 %v276
        %v655 = vpop.f32.mrb[0].mxu0
        %v656 = vadd.f32 0.0, %v655
        %v657 = vpop.f32.mrb[0].mxu0
        %658 = vmatprep.mubr.f32.mxu0 %v279
        %659 = vmatmul.mubr.f32.gmra.mrb[0].mxu0 %v278
        %v660 = vpop.f32.mrb[0].mxu0
        %v661 = vadd.f32 0.0, %v660
        %v662 = vpop.f32.mrb[0].mxu0
        %663 = vmatprep.mubr.f32.mxu0 %v281
        %664 = vmatmul.mubr.f32.gmra.mrb[0].mxu0 %v280
        %v665 = vpop.f32.mrb[0].mxu0
        %v666 = vadd.f32 0.0, %v665
        %v667 = vpop.f32.mrb[0].mxu0
        %668 = vmatprep.mubr.f32.mxu0 %v283
        %669 = vmatmul.mubr.f32.gmra.mrb[0].mxu0 %v282
        %v670 = vpop.f32.mrb[0].mxu0
        %v671 = vadd.f32 0.0, %v670
        %v672 = vpop.f32.mrb[0].mxu0
        %673 = vmatprep.mubr.f32.mxu0 %v285
        %674 = vmatmul.mubr.f32.gmra.mrb[0].mxu0 %v284
        %v675 = vpop.f32.mrb[0].mxu0
        %v676 = vadd.f32 0.0, %v675
        %v677 = vpop.f32.mrb[0].mxu0
        %678 = vmatprep.mubr.f32.mxu0 %v287
        %679 = vmatmul.mubr.f32.gmra.mrb[0].mxu0 %v286
        %v680 = vpop.f32.mrb[0].mxu0
        %v681 = vadd.f32 0.0, %v680
        %v682 = vpop.f32.mrb[0].mxu0
        %683 = vmatprep.mubr.f32.mxu0 %v289
        %684 = vmatmul.mubr.f32.gmra.mrb[0].mxu0 %v288
        %v685 = vpop.f32.mrb[0].mxu0
        %v686 = vadd.f32 0.0, %v685
        %v687 = vpop.f32.mrb[0].mxu0
        %688 = vmatprep.mubr.f32.mxu0 %v291
        %689 = vmatmul.mubr.f32.gmra.mrb[0].mxu0 %v290
        %v690 = vpop.f32.mrb[0].mxu0
        %v691 = vadd.f32 0.0, %v690
        %v692 = vpop.f32.mrb[0].mxu0
        %693 = vdwg.mxu0
        %694 = vst [vmem:[%s249] sm:$0xff] %v455
        %695 = vst [vmem:[%s249 + $0x8] sm:$0xff] %v457
        %696 = vst [vmem:[%s249 + $0x10] sm:$0xff] %v616
        %697 = vst [vmem:[%s249 + $0x18] sm:$0xff] %v461
        %698 = vst [vmem:[%s249 + $0x20] sm:$0xff] %v463
        %699 = vst [vmem:[%s249 + $0x28] sm:$0xff] %v621
        %700 = vst [vmem:[%s249 + $0x30] sm:$0xff] %v467
        %701 = vst [vmem:[%s249 + $0x38] sm:$0xff] %v469
        %702 = vst [vmem:[%s249 + $0x40] sm:$0xff] %v626
        %703 = vst [vmem:[%s249 + $0x48] sm:$0xff] %v473
        %704 = vst [vmem:[%s249 + $0x50] sm:$0xff] %v475
        %705 = vst [vmem:[%s249 + $0x58] sm:$0xff] %v631
        %706 = vst [vmem:[%s249 + $0x60] sm:$0xff] %v479
        %707 = vst [vmem:[%s249 + $0x68] sm:$0xff] %v481
        %708 = vst [vmem:[%s249 + $0x70] sm:$0xff] %v636
        %709 = vst [vmem:[%s249 + $0x78] sm:$0xff] %v485
        %710 = vst [vmem:[%s249 + $0x80] sm:$0xff] %v487
        %711 = vst [vmem:[%s249 + $0x88] sm:$0xff] %v641
        %712 = vst [vmem:[%s249 + $0x90] sm:$0xff] %v491
        %713 = vst [vmem:[%s249 + $0x98] sm:$0xff] %v493
        %714 = vst [vmem:[%s249 + $0xa0] sm:$0xff] %v646
        %715 = vst [vmem:[%s249 + $0xa8] sm:$0xff] %v497
        %716 = vst [vmem:[%s249 + $0xb0] sm:$0xff] %v499
        %717 = vst [vmem:[%s249 + $0xb8] sm:$0xff] %v651
        %718 = vst [vmem:[%s249 + $0xc0] sm:$0xff] %v503
        %719 = vst [vmem:[%s249 + $0xc8] sm:$0xff] %v505
        %720 = vst [vmem:[%s249 + $0xd0] sm:$0xff] %v656
        %721 = vst [vmem:[%s249 + $0xd8] sm:$0xff] %v509
        %722 = vst [vmem:[%s249 + $0xe0] sm:$0xff] %v511
        %723 = vst [vmem:[%s249 + $0xe8] sm:$0xff] %v661
        %724 = vst [vmem:[%s249 + $0xf0] sm:$0xff] %v515
        %725 = vst [vmem:[%s249 + $0xf8] sm:$0xff] %v517
        %726 = vst [vmem:[%s249 + $0x100] sm:$0xff] %v666
        %727 = vst [vmem:[%s249 + $0x108] sm:$0xff] %v521
        %728 = vst [vmem:[%s249 + $0x110] sm:$0xff] %v523
        %729 = vst [vmem:[%s249 + $0x118] sm:$0xff] %v671
        %730 = vst [vmem:[%s249 + $0x120] sm:$0xff] %v527
        %731 = vst [vmem:[%s249 + $0x128] sm:$0xff] %v529
        %732 = vst [vmem:[%s249 + $0x130] sm:$0xff] %v676
        %733 = vst [vmem:[%s249 + $0x138] sm:$0xff] %v533
        %734 = vst [vmem:[%s249 + $0x140] sm:$0xff] %v535
        %735 = vst [vmem:[%s249 + $0x148] sm:$0xff] %v681
        %736 = vst [vmem:[%s249 + $0x150] sm:$0xff] %v539
        %737 = vst [vmem:[%s249 + $0x158] sm:$0xff] %v541
        %738 = vst [vmem:[%s249 + $0x160] sm:$0xff] %v686
        %739 = vst [vmem:[%s249 + $0x168] sm:$0xff] %v545
        %740 = vst [vmem:[%s249 + $0x170] sm:$0xff] %v547
        %741 = vst [vmem:[%s249 + $0x178] sm:$0xff] %v691
        %v742 = vld [vmem:[#allocation7] sm:$0xff]
        %v743 = vld [vmem:[#allocation7 + $0x8] sm:$0xff]
        %v744 = vld [vmem:[#allocation7 + $0x10] sm:$0xff]
        %v745 = vld [vmem:[#allocation7 + $0x18] sm:$0xff]
        %v746 = vld [vmem:[#allocation7 + $0x20] sm:$0xff]
        %v747 = vld [vmem:[#allocation7 + $0x28] sm:$0xff]
        %v748 = vld [vmem:[#allocation7 + $0x30] sm:$0xff]
        %v749 = vld [vmem:[#allocation7 + $0x38] sm:$0xff]
        %v750 = vld [vmem:[#allocation7 + $0x40] sm:$0xff]
        %v751 = vld [vmem:[#allocation7 + $0x48] sm:$0xff]
        %v752 = vld [vmem:[#allocation7 + $0x50] sm:$0xff]
        %v753 = vld [vmem:[#allocation7 + $0x58] sm:$0xff]
        %v754 = vld [vmem:[#allocation7 + $0x60] sm:$0xff]
        %v755 = vld [vmem:[#allocation7 + $0x68] sm:$0xff]
        %v756 = vld [vmem:[#allocation7 + $0x70] sm:$0xff]
        %v757 = vld [vmem:[#allocation7 + $0x78] sm:$0xff]
        %v758 = vld [vmem:[#allocation7 + $0x80] sm:$0xff]
        %v759 = vld [vmem:[#allocation7 + $0x88] sm:$0xff]
        %v760 = vld [vmem:[#allocation7 + $0x90] sm:$0xff]
        %v761 = vld [vmem:[#allocation7 + $0x98] sm:$0xff]
        %v762 = vld [vmem:[#allocation7 + $0xa0] sm:$0xff]
        %v763 = vld [vmem:[#allocation7 + $0xa8] sm:$0xff]
        %v764 = vld [vmem:[#allocation7 + $0xb0] sm:$0xff]
        %v765 = vld [vmem:[#allocation7 + $0xb8] sm:$0xff]
        %v766 = vld [vmem:[#allocation7 + $0xc0] sm:$0xff]
        %v767 = vld [vmem:[#allocation7 + $0xc8] sm:$0xff]
        %v768 = vld [vmem:[#allocation7 + $0xd0] sm:$0xff]
        %v769 = vld [vmem:[#allocation7 + $0xd8] sm:$0xff]
        %v770 = vld [vmem:[#allocation7 + $0xe0] sm:$0xff]
        %v771 = vld [vmem:[#allocation7 + $0xe8] sm:$0xff]
        %v772 = vld [vmem:[#allocation7 + $0xf0] sm:$0xff]
        %v773 = vld [vmem:[#allocation7 + $0xf8] sm:$0xff]
        %v774 = vld [vmem:[#allocation7 + $0x100] sm:$0xff]
        %v775 = vld [vmem:[#allocation7 + $0x108] sm:$0xff]
        %v776 = vld [vmem:[#allocation7 + $0x110] sm:$0xff]
        %v777 = vld [vmem:[#allocation7 + $0x118] sm:$0xff]
        %v778 = vld [vmem:[#allocation7 + $0x120] sm:$0xff]
        %v779 = vld [vmem:[#allocation7 + $0x128] sm:$0xff]
        %v780 = vld [vmem:[#allocation7 + $0x130] sm:$0xff]
        %v781 = vld [vmem:[#allocation7 + $0x138] sm:$0xff]
        %v782 = vld [vmem:[#allocation7 + $0x140] sm:$0xff]
        %v783 = vld [vmem:[#allocation7 + $0x148] sm:$0xff]
        %v784 = vld [vmem:[#allocation7 + $0x150] sm:$0xff]
        %v785 = vld [vmem:[#allocation7 + $0x158] sm:$0xff]
        %v786 = vld [vmem:[#allocation7 + $0x160] sm:$0xff]
        %v787 = vld [vmem:[#allocation7 + $0x168] sm:$0xff]
        %v788 = vld [vmem:[#allocation7 + $0x170] sm:$0xff]
        %v789 = vld [vmem:[#allocation7 + $0x178] sm:$0xff]
        %790 = vmatprep.subr.mxu0 0.0
        %791 = vmatpush1.msra.mxu0 %v742
        %792 = vmatprep.subr.mxu0 0.0
        %793 = vmatpush1.msra.mxu0 %v743
        %794 = vmatprep.subr.mxu0 0.0
        %795 = vmatpush1.msra.mxu0 %v744
        %796 = vmatprep.subr.mxu0 0.0
        %797 = vmatpush1.msra.mxu0 %v745
        %798 = vmatprep.subr.mxu0 0.0
        %799 = vmatpush1.msra.mxu0 %v746
        %800 = vmatprep.subr.mxu0 0.0
        %801 = vmatpush1.msra.mxu0 %v747
        %802 = vmatprep.subr.mxu0 0.0
        %803 = vmatpush1.msra.mxu0 %v748
        %804 = vmatprep.subr.mxu0 0.0
        %805 = vmatpush1.msra.mxu0 %v749
        %806 = vmatprep.subr.mxu0 0.0
        %807 = vmatpush1.msra.mxu0 %v750
        %808 = vmatprep.subr.mxu0 0.0
        %809 = vmatpush1.msra.mxu0 %v751
        %810 = vmatprep.subr.mxu0 0.0
        %811 = vmatpush1.msra.mxu0 %v752
        %812 = vmatprep.subr.mxu0 0.0
        %813 = vmatpush1.msra.mxu0 %v753
        %814 = vmatprep.subr.mxu0 0.0
        %815 = vmatpush1.msra.mxu0 %v754
        %816 = vmatprep.subr.mxu0 0.0
        %817 = vmatpush1.msra.mxu0 %v755
        %818 = vmatprep.subr.mxu0 0.0
        %819 = vmatpush1.msra.mxu0 %v756
        %820 = vmatprep.subr.mxu0 0.0
        %821 = vmatpush1.msra.mxu0 %v757
        %822 = vmatprep.subr.mxu0 0.0
        %823 = vmatpush1.msra.mxu0 %v758
        %824 = vmatprep.subr.mxu0 0.0
        %825 = vmatpush1.msra.mxu0 %v759
        %826 = vmatprep.subr.mxu0 0.0
        %827 = vmatpush1.msra.mxu0 %v760
        %828 = vmatprep.subr.mxu0 0.0
        %829 = vmatpush1.msra.mxu0 %v761
        %830 = vmatprep.subr.mxu0 0.0
        %831 = vmatpush1.msra.mxu0 %v762
        %832 = vmatprep.subr.mxu0 0.0
        %833 = vmatpush1.msra.mxu0 %v763
        %834 = vmatprep.subr.mxu0 0.0
        %835 = vmatpush1.msra.mxu0 %v764
        %836 = vmatprep.subr.mxu0 0.0
        %837 = vmatpush1.msra.mxu0 %v765
        %838 = vmatprep.subr.mxu0 0.0
        %839 = vmatpush1.msra.mxu0 %v766
        %840 = vmatprep.subr.mxu0 0.0
        %841 = vmatpush1.msra.mxu0 %v767
        %842 = vmatprep.subr.mxu0 0.0
        %843 = vmatpush1.msra.mxu0 %v768
        %844 = vmatprep.subr.mxu0 0.0
        %845 = vmatpush1.msra.mxu0 %v769
        %846 = vmatprep.subr.mxu0 0.0
        %847 = vmatpush1.msra.mxu0 %v770
        %848 = vmatprep.subr.mxu0 0.0
        %849 = vmatpush1.msra.mxu0 %v771
        %850 = vmatprep.subr.mxu0 0.0
        %851 = vmatpush1.msra.mxu0 %v772
        %852 = vmatprep.subr.mxu0 0.0
        %853 = vmatpush1.msra.mxu0 %v773
        %854 = vmatprep.mubr.f32.mxu0 %v457
        %855 = vmatmul.mubr.f32.gmra.mrb[0].mxu0 %v455
        %v856 = vpop.f32.mrb[0].mxu0
        %v857 = vadd.f32 0.0, %v856
        %v858 = vpop.f32.mrb[0].mxu0
        %859 = vmatprep.mubr.f32.mxu0 %v463
        %860 = vmatmul.mubr.f32.gmra.mrb[0].mxu0 %v461
        %v861 = vpop.f32.mrb[0].mxu0
        %v862 = vadd.f32 0.0, %v861
        %v863 = vpop.f32.mrb[0].mxu0
        %864 = vmatprep.mubr.f32.mxu0 %v469
        %865 = vmatmul.mubr.f32.gmra.mrb[0].mxu0 %v467
        %v866 = vpop.f32.mrb[0].mxu0
        %v867 = vadd.f32 0.0, %v866
        %v868 = vpop.f32.mrb[0].mxu0
        %869 = vmatprep.mubr.f32.mxu0 %v475
        %870 = vmatmul.mubr.f32.gmra.mrb[0].mxu0 %v473
        %v871 = vpop.f32.mrb[0].mxu0
        %v872 = vadd.f32 0.0, %v871
        %v873 = vpop.f32.mrb[0].mxu0
        %874 = vmatprep.mubr.f32.mxu0 %v481
        %875 = vmatmul.mubr.f32.gmra.mrb[0].mxu0 %v479
        %v876 = vpop.f32.mrb[0].mxu0
        %v877 = vadd.f32 0.0, %v876
        %v878 = vpop.f32.mrb[0].mxu0
        %879 = vmatprep.mubr.f32.mxu0 %v487
        %880 = vmatmul.mubr.f32.gmra.mrb[0].mxu0 %v485
        %v881 = vpop.f32.mrb[0].mxu0
        %v882 = vadd.f32 0.0, %v881
        %v883 = vpop.f32.mrb[0].mxu0
        %884 = vmatprep.mubr.f32.mxu0 %v493
        %885 = vmatmul.mubr.f32.gmra.mrb[0].mxu0 %v491
        %v886 = vpop.f32.mrb[0].mxu0
        %v887 = vadd.f32 0.0, %v886
        %v888 = vpop.f32.mrb[0].mxu0
        %889 = vmatprep.mubr.f32.mxu0 %v499
        %890 = vmatmul.mubr.f32.gmra.mrb[0].mxu0 %v497
        %v891 = vpop.f32.mrb[0].mxu0
        %v892 = vadd.f32 0.0, %v891
        %v893 = vpop.f32.mrb[0].mxu0
        %894 = vmatprep.mubr.f32.mxu0 %v505
        %895 = vmatmul.mubr.f32.gmra.mrb[0].mxu0 %v503
        %v896 = vpop.f32.mrb[0].mxu0
        %v897 = vadd.f32 0.0, %v896
        %v898 = vpop.f32.mrb[0].mxu0
        %899 = vmatprep.mubr.f32.mxu0 %v511
        %900 = vmatmul.mubr.f32.gmra.mrb[0].mxu0 %v509
        %v901 = vpop.f32.mrb[0].mxu0
        %v902 = vadd.f32 0.0, %v901
        %v903 = vpop.f32.mrb[0].mxu0
        %904 = vmatprep.mubr.f32.mxu0 %v517
        %905 = vmatmul.mubr.f32.gmra.mrb[0].mxu0 %v515
        %v906 = vpop.f32.mrb[0].mxu0
        %v907 = vadd.f32 0.0, %v906
        %v908 = vpop.f32.mrb[0].mxu0
        %909 = vmatprep.mubr.f32.mxu0 %v523
        %910 = vmatmul.mubr.f32.gmra.mrb[0].mxu0 %v521
        %v911 = vpop.f32.mrb[0].mxu0
        %v912 = vadd.f32 0.0, %v911
        %v913 = vpop.f32.mrb[0].mxu0
        %914 = vmatprep.mubr.f32.mxu0 %v529
        %915 = vmatmul.mubr.f32.gmra.mrb[0].mxu0 %v527
        %v916 = vpop.f32.mrb[0].mxu0
        %v917 = vadd.f32 0.0, %v916
        %v918 = vpop.f32.mrb[0].mxu0
        %919 = vmatprep.mubr.f32.mxu0 %v535
        %920 = vmatmul.mubr.f32.gmra.mrb[0].mxu0 %v533
        %v921 = vpop.f32.mrb[0].mxu0
        %v922 = vadd.f32 0.0, %v921
        %v923 = vpop.f32.mrb[0].mxu0
        %924 = vmatprep.mubr.f32.mxu0 %v541
        %925 = vmatmul.mubr.f32.gmra.mrb[0].mxu0 %v539
        %v926 = vpop.f32.mrb[0].mxu0
        %v927 = vadd.f32 0.0, %v926
        %v928 = vpop.f32.mrb[0].mxu0
        %929 = vmatprep.mubr.f32.mxu0 %v547
        %930 = vmatmul.mubr.f32.gmra.mrb[0].mxu0 %v545
        %v931 = vpop.f32.mrb[0].mxu0
        %v932 = vadd.f32 0.0, %v931
        %v933 = vpop.f32.mrb[0].mxu0
        %934 = vdwg.mxu0
        %935 = vmatprep.subr.mxu0 0.0
        %936 = vmatpush1.msra.mxu0 %v774
        %937 = vmatprep.subr.mxu0 0.0
        %938 = vmatpush1.msra.mxu0 %v775
        %939 = vmatprep.subr.mxu0 0.0
        %940 = vmatpush1.msra.mxu0 %v776
        %941 = vmatprep.subr.mxu0 0.0
        %942 = vmatpush1.msra.mxu0 %v777
        %943 = vmatprep.subr.mxu0 0.0
        %944 = vmatpush1.msra.mxu0 %v778
        %945 = vmatprep.subr.mxu0 0.0
        %946 = vmatpush1.msra.mxu0 %v779
        %947 = vmatprep.subr.mxu0 0.0
        %948 = vmatpush1.msra.mxu0 %v780
        %949 = vmatprep.subr.mxu0 0.0
        %950 = vmatpush1.msra.mxu0 %v781
        %951 = vmatprep.subr.mxu0 0.0
        %952 = vmatpush1.msra.mxu0 %v782
        %953 = vmatprep.subr.mxu0 0.0
        %954 = vmatpush1.msra.mxu0 %v783
        %955 = vmatprep.subr.mxu0 0.0
        %956 = vmatpush1.msra.mxu0 %v784
        %957 = vmatprep.subr.mxu0 0.0
        %958 = vmatpush1.msra.mxu0 %v785
        %959 = vmatprep.subr.mxu0 0.0
        %960 = vmatpush1.msra.mxu0 %v786
        %961 = vmatprep.subr.mxu0 0.0
        %962 = vmatpush1.msra.mxu0 %v787
        %963 = vmatprep.subr.mxu0 0.0
        %964 = vmatpush1.msra.mxu0 %v788
        %965 = vmatprep.subr.mxu0 0.0
        %966 = vmatpush1.msra.mxu0 %v789
        %967 = vmatprep.subr.mxu0 0.0
        %968 = vmatpush1.msra.mxu0 0.0
        %969 = vmatprep.subr.mxu0 0.0
        %970 = vmatpush1.msra.mxu0 0.0
        %971 = vmatprep.subr.mxu0 0.0
        %972 = vmatpush1.msra.mxu0 0.0
        %973 = vmatprep.subr.mxu0 0.0
        %974 = vmatpush1.msra.mxu0 0.0
        %975 = vmatprep.subr.mxu0 0.0
        %976 = vmatpush1.msra.mxu0 0.0
        %977 = vmatprep.subr.mxu0 0.0
        %978 = vmatpush1.msra.mxu0 0.0
        %979 = vmatprep.subr.mxu0 0.0
        %980 = vmatpush1.msra.mxu0 0.0
        %981 = vmatprep.subr.mxu0 0.0
        %982 = vmatpush1.msra.mxu0 0.0
        %983 = vmatprep.subr.mxu0 0.0
        %984 = vmatpush1.msra.mxu0 0.0
        %985 = vmatprep.subr.mxu0 0.0
        %986 = vmatpush1.msra.mxu0 0.0
        %987 = vmatprep.subr.mxu0 0.0
        %988 = vmatpush1.msra.mxu0 0.0
        %989 = vmatprep.subr.mxu0 0.0
        %990 = vmatpush1.msra.mxu0 0.0
        %991 = vmatprep.subr.mxu0 0.0
        %992 = vmatpush1.msra.mxu0 0.0
        %993 = vmatprep.subr.mxu0 0.0
        %994 = vmatpush1.msra.mxu0 0.0
        %995 = vmatprep.subr.mxu0 0.0
        %996 = vmatpush1.msra.mxu0 0.0
        %997 = vmatprep.subr.mxu0 0.0
        %998 = vmatpush1.msra.mxu0 0.0
        %999 = vmatprep.mubr.f32.mxu0 0.0
        %1000 = vmatmul.mubr.f32.gmra.mrb[0].mxu0 %v616
        %v1001 = vpop.f32.mrb[0].mxu0
        %v1002 = vadd.f32 %v857, %v1001
        %v1003 = vpop.f32.mrb[0].mxu0
        %1004 = vmatprep.mubr.f32.mxu0 0.0
        %1005 = vmatmul.mubr.f32.gmra.mrb[0].mxu0 %v621
        %v1006 = vpop.f32.mrb[0].mxu0
        %v1007 = vadd.f32 %v862, %v1006
        %v1008 = vpop.f32.mrb[0].mxu0
        %1009 = vmatprep.mubr.f32.mxu0 0.0
        %1010 = vmatmul.mubr.f32.gmra.mrb[0].mxu0 %v626
        %v1011 = vpop.f32.mrb[0].mxu0
        %v1012 = vadd.f32 %v867, %v1011
        %v1013 = vpop.f32.mrb[0].mxu0
        %1014 = vmatprep.mubr.f32.mxu0 0.0
        %1015 = vmatmul.mubr.f32.gmra.mrb[0].mxu0 %v631
        %v1016 = vpop.f32.mrb[0].mxu0
        %v1017 = vadd.f32 %v872, %v1016
        %v1018 = vpop.f32.mrb[0].mxu0
        %1019 = vmatprep.mubr.f32.mxu0 0.0
        %1020 = vmatmul.mubr.f32.gmra.mrb[0].mxu0 %v636
        %v1021 = vpop.f32.mrb[0].mxu0
        %v1022 = vadd.f32 %v877, %v1021
        %v1023 = vpop.f32.mrb[0].mxu0
        %1024 = vmatprep.mubr.f32.mxu0 0.0
        %1025 = vmatmul.mubr.f32.gmra.mrb[0].mxu0 %v641
        %v1026 = vpop.f32.mrb[0].mxu0
        %v1027 = vadd.f32 %v882, %v1026
        %v1028 = vpop.f32.mrb[0].mxu0
        %1029 = vmatprep.mubr.f32.mxu0 0.0
        %1030 = vmatmul.mubr.f32.gmra.mrb[0].mxu0 %v646
        %v1031 = vpop.f32.mrb[0].mxu0
        %v1032 = vadd.f32 %v887, %v1031
        %v1033 = vpop.f32.mrb[0].mxu0
        %1034 = vmatprep.mubr.f32.mxu0 0.0
        %1035 = vmatmul.mubr.f32.gmra.mrb[0].mxu0 %v651
        %v1036 = vpop.f32.mrb[0].mxu0
        %v1037 = vadd.f32 %v892, %v1036
        %v1038 = vpop.f32.mrb[0].mxu0
        %1039 = vmatprep.mubr.f32.mxu0 0.0
        %1040 = vmatmul.mubr.f32.gmra.mrb[0].mxu0 %v656
        %v1041 = vpop.f32.mrb[0].mxu0
        %v1042 = vadd.f32 %v897, %v1041
        %v1043 = vpop.f32.mrb[0].mxu0
        %1044 = vmatprep.mubr.f32.mxu0 0.0
        %1045 = vmatmul.mubr.f32.gmra.mrb[0].mxu0 %v661
        %v1046 = vpop.f32.mrb[0].mxu0
        %v1047 = vadd.f32 %v902, %v1046
        %v1048 = vpop.f32.mrb[0].mxu0
        %1049 = vmatprep.mubr.f32.mxu0 0.0
        %1050 = vmatmul.mubr.f32.gmra.mrb[0].mxu0 %v666
        %v1051 = vpop.f32.mrb[0].mxu0
        %v1052 = vadd.f32 %v907, %v1051
        %v1053 = vpop.f32.mrb[0].mxu0
        %1054 = vmatprep.mubr.f32.mxu0 0.0
        %1055 = vmatmul.mubr.f32.gmra.mrb[0].mxu0 %v671
        %v1056 = vpop.f32.mrb[0].mxu0
        %v1057 = vadd.f32 %v912, %v1056
        %v1058 = vpop.f32.mrb[0].mxu0
        %1059 = vmatprep.mubr.f32.mxu0 0.0
        %1060 = vmatmul.mubr.f32.gmra.mrb[0].mxu0 %v676
        %v1061 = vpop.f32.mrb[0].mxu0
        %v1062 = vadd.f32 %v917, %v1061
        %v1063 = vpop.f32.mrb[0].mxu0
        %1064 = vmatprep.mubr.f32.mxu0 0.0
        %1065 = vmatmul.mubr.f32.gmra.mrb[0].mxu0 %v681
        %v1066 = vpop.f32.mrb[0].mxu0
        %v1067 = vadd.f32 %v922, %v1066
        %v1068 = vpop.f32.mrb[0].mxu0
        %1069 = vmatprep.mubr.f32.mxu0 0.0
        %1070 = vmatmul.mubr.f32.gmra.mrb[0].mxu0 %v686
        %v1071 = vpop.f32.mrb[0].mxu0
        %v1072 = vadd.f32 %v927, %v1071
        %v1073 = vpop.f32.mrb[0].mxu0
        %1074 = vmatprep.mubr.f32.mxu0 0.0
        %1075 = vmatmul.mubr.f32.gmra.mrb[0].mxu0 %v691
        %v1076 = vpop.f32.mrb[0].mxu0
        %v1077 = vadd.f32 %v932, %v1076
        %v1078 = vpop.f32.mrb[0].mxu0
        %1079 = vdwg.mxu0
        %1080 = vst [vmem:[%s256] sm:$0xff] %v1002
        %1081 = vst [vmem:[%s256 + $0x8] sm:$0xff] %v1007
        %1082 = vst [vmem:[%s256 + $0x10] sm:$0xff] %v1012
        %1083 = vst [vmem:[%s256 + $0x18] sm:$0xff] %v1017
        %1084 = vst [vmem:[%s256 + $0x20] sm:$0xff] %v1022
        %1085 = vst [vmem:[%s256 + $0x28] sm:$0xff] %v1027
        %1086 = vst [vmem:[%s256 + $0x30] sm:$0xff] %v1032
        %1087 = vst [vmem:[%s256 + $0x38] sm:$0xff] %v1037
        %1088 = vst [vmem:[%s256 + $0x40] sm:$0xff] %v1042
        %1089 = vst [vmem:[%s256 + $0x48] sm:$0xff] %v1047
        %1090 = vst [vmem:[%s256 + $0x50] sm:$0xff] %v1052
        %1091 = vst [vmem:[%s256 + $0x58] sm:$0xff] %v1057
        %1092 = vst [vmem:[%s256 + $0x60] sm:$0xff] %v1062
        %1093 = vst [vmem:[%s256 + $0x68] sm:$0xff] %v1067
        %1094 = vst [vmem:[%s256 + $0x70] sm:$0xff] %v1072
        %1095 = vst [vmem:[%s256 + $0x78] sm:$0xff] %v1077
        %s1096 = sand.u32 %s102, 1
        %s1097 = scalar_lea.sflag [#allocation4], %s1096
        %s1098 = sand.u32 %s102, 1
        %s1099 = smul.addr %s1098, 384
        %s1100 = scalar_lea.vmem [#allocation8], %s1099
        %s1101 = sand.u32 %s128, 1
        %s1102 = scalar_lea.sflag [#allocation10], %s1101
        %s1103 = sand.u32 %s128, 1
        %s1104 = smul.addr %s1103, 128
        %s1105 = scalar_lea.vmem [#allocation9], %s1104
        // Predicated region
        $region45: #{tpu_custom_call.1} parent=31 // pred_check
          %p1106 = pneg %p112
        $region46: #{tpu_custom_call.1} parent=31 // pred_check_branch
          %1108 = sbr.rel (%p1106) target = $region48
        $region47: #{tpu_custom_call.1} parent=31 // pred_region
          %s1109 = smul.u32 16, %s26
          %s1111 = ssub.s32 6144, 6144
          %1112 = vsyncadd %s1097, %s1111
          %s1113 = smul.addr %s1109, 3
          %s1114 = smul.addr %s1113, 128
          %s1115 = scalar_lea.hbm %s3, %s1114
          %s1116 = sshll.u32 %s1100, 4
          %s1117 = int_to_ptr.vmem [resolvable:$true] %s1116
          %1122 = dma.vmem_to_hbm [thread:$0]  %s1117, 6144, %s1115, %s1097, 384, 384, 24
        $region48: #{tpu_custom_call.1} parent=31 // pred_fallthru
          _
        // Predicated region
        $region49: #{tpu_custom_call.1} parent=31 // pred_check
          %p1123 = pneg %p138
        $region50: #{tpu_custom_call.1} parent=31 // pred_check_branch
          %1125 = sbr.rel (%p1123) target = $region52
        $region51: #{tpu_custom_call.1} parent=31 // pred_region
          %s1126 = smul.u32 16, %s26
          %s1128 = ssub.s32 2048, 2048
          %1129 = vsyncadd %s1102, %s1128
          %s1130 = smul.addr %s1126, 128
          %s1131 = scalar_lea.hbm %s4, %s1130
          %s1132 = sshll.u32 %s1105, 4
          %s1133 = int_to_ptr.vmem [resolvable:$true] %s1132
          %1138 = dma.vmem_to_hbm [thread:$0]  %s1133, 2048, %s1131, %s1102, 128, 128, 8
        $region52: #{tpu_custom_call.1} parent=31 // pred_fallthru
          _
      $region32: #{tpu_custom_call.1} parent=5 // pred_fallthru
        _
      %p1139 = scmp.le.s32.totalorder 2, %s21
      // Predicated region
      $region53: #{tpu_custom_call.1} parent=5 // pred_check
        %p1140 = pneg %p1139
      $region54: #{tpu_custom_call.1} parent=5 // pred_check_branch
        %1142 = sbr.rel (%p1140) target = $region56
      $region55: #{tpu_custom_call.1} parent=5 // pred_region
        %s1143 = ssub.s32 %s21, 2
        // Predicated region
        $region57: #{tpu_custom_call.1} parent=55 // pred_check
          %p1144 = pneg %p118
        $region58: #{tpu_custom_call.1} parent=55 // pred_check_branch
          %1146 = sbr.rel (%p1144) target = $region60
        $region59: #{tpu_custom_call.1} parent=55 // pred_region
          %s1147 = sand.u32 %s103, 1
          %s1148 = scalar_lea.sflag [#allocation4], %s1147
          %s1149 = sand.u32 %s103, 1
          %s1150 = smul.addr %s1149, 384
          %s1151 = scalar_lea.vmem [#allocation8], %s1150
          %1152 = dma.done %s1148, 6144
        $region60: #{tpu_custom_call.1} parent=55 // pred_fallthru
          _
        // Predicated region
        $region61: #{tpu_custom_call.1} parent=55 // pred_check
          %p1153 = pneg %p144
        $region62: #{tpu_custom_call.1} parent=55 // pred_check_branch
          %1155 = sbr.rel (%p1153) target = $region64
        $region63: #{tpu_custom_call.1} parent=55 // pred_region
          %s1156 = sand.u32 %s129, 1
          %s1157 = scalar_lea.sflag [#allocation10], %s1156
          %s1158 = sand.u32 %s129, 1
          %s1159 = smul.addr %s1158, 128
          %s1160 = scalar_lea.vmem [#allocation9], %s1159
          %1161 = dma.done %s1157, 2048
        $region64: #{tpu_custom_call.1} parent=55 // pred_fallthru
          _
      $region56: #{tpu_custom_call.1} parent=5 // pred_fallthru
        _
    $region6: #{tpu_custom_call.1} parent=1 // loop_footer
      %s25 = sadd.s32 1, %s21
    $region7: #{tpu_custom_call.1} parent=1 // loop_footer_branch
      %20 = sbr.rel target = $region3
    $region8: #{tpu_custom_call.1} parent=1 // loop_exit
      _
    %1162 = vsyncpa [#allocation3], 1
    %s1163 = scalar_lea.sflag [#allocation3], 1
    %1164 = vsyncpa %s1163, 1
    %1165 = vsyncpa [#allocation6], 1
    %1166 = vsyncpa [#allocation4], 1
    %s1167 = scalar_lea.sflag [#allocation4], 1
    %1168 = vsyncpa %s1167, 1
    %1169 = vsyncpa [#allocation10], 1
    %s1170 = scalar_lea.sflag [#allocation10], 1
    %1171 = vsyncpa %s1170, 1

</llo_original>
